<compile_context>
chip_gen: v7x
topology: tpu7x:2x2x1
jax: 0.10.0
libtpu: 0.0.40
codegen_flags: <defaults>
</compile_context>

<pallas_src>
import jax
import jax.numpy as jnp
from jax.experimental import pallas as pl
from jax.experimental.pallas import tpu as pltpu
from jax.scipy.linalg import block_diag

# ---------------------------------------------------------------------------
# Model hyper-parameters (match the PyTorch module defaults)
# ---------------------------------------------------------------------------
H = 8
W = 8
N = H * W                       # tokens per image (64)
WF = W // 2 + 1                 # rfft width (5)
NF = H * WF                     # kept 2-D frequencies per image (40)
DIM = 32                        # channels
MLP_RATIO = 4.0
HIDDEN = int(DIM * MLP_RATIO)   # 128
LN_EPS = 1e-5
B = 2                           # batch for the example

# Derived layout constants (used for static in-kernel slab slicing)
BN = B * N                      # 128 batch-flattened token rows
HALF = B * NF                   # 80  rows per Re / Im half of the stacked spectrum
KST = 2 * HALF                  # 160 stacked spectrum rows [Re(b=0..B-1); Im(b=0..B-1)]

# slab32 (lane width DIM) row offsets — all multiples of 8
OFF_W1 = 0                      # (KST, DIM)   Re part of gamma1-folded filter weight
OFF_W2 = OFF_W1 + KST           # (KST, DIM)   -/+ Im part
OFF_FB = OFF_W2 + KST           # (BN, DIM)    beta1 bias field, tiled over batch
OFF_W2M = OFF_FB + BN           # (HIDDEN, DIM) fc2 weight
OFF_BB2 = OFF_W2M + HIDDEN      # (1, DIM)     fc2 bias  (row 576)
S32_ROWS = OFF_BB2 + 8          # 584

# slab128 (lane width HIDDEN) row offsets
OFF_W1M = 0                     # (DIM, HIDDEN) fc1 weight (gamma2 folded)
OFF_BB1 = DIM                   # (1, HIDDEN)   fc1 bias   (beta2 folded)
S128_ROWS = OFF_BB1 + 8         # 40

_INV_SQRT2 = 0.7071067811865476


# ---------------------------------------------------------------------------
# Pallas kernel: the entire batch in a single grid step.
# ---------------------------------------------------------------------------
def gfnet_block_kernel(x_ref, a_ref, binv_ref, s32_ref, s128_ref, o_ref):
    x = x_ref[...]                                              # (BN, DIM)

    # ---- LayerNorm 1 (biased variance via E[x^2]-mu^2; affine folded away)
    mu = jnp.mean(x, axis=-1, keepdims=True)
    msq = jnp.mean(x * x, axis=-1, keepdims=True)
    z = (x - mu) * jax.lax.rsqrt(msq - mu * mu + LN_EPS)        # (BN, DIM)

    # ---- GlobalFilter: forward block real-DFT as ONE MXU matmul.
    #      Rows of xf are [Re(im 0..B-1); Im(im 0..B-1)], channels ride on lanes.
    xf = jnp.dot(a_ref[...], z, preferred_element_type=jnp.float32)      # (KST, DIM)

    # Stacked complex-weight multiply; the Re<->Im swap is a sublane roll (XLU).
    w1s = s32_ref[OFF_W1:OFF_W1 + KST, :]
    w2s = s32_ref[OFF_W2:OFF_W2 + KST, :]
    y = xf * w1s + pltpu.roll(xf, shift=HALF, axis=0) * w2s              # (KST, DIM)

    # Fused inverse block DFT (single K=KST matmul) + beta1 bias field + residual 1.
    fb = s32_ref[OFF_FB:OFF_FB + BN, :]
    x = x + jnp.dot(binv_ref[...], y, preferred_element_type=jnp.float32) + fb

    # ---- LayerNorm 2 (affine folded into fc1)
    mu2 = jnp.mean(x, axis=-1, keepdims=True)
    msq2 = jnp.mean(x * x, axis=-1, keepdims=True)
    z2 = (x - mu2) * jax.lax.rsqrt(msq2 - mu2 * mu2 + LN_EPS)

    # ---- MLP: Linear -> exact GELU (erf) -> Linear
    w1m = s128_ref[OFF_W1M:OFF_W1M + DIM, :]
    bb1 = s128_ref[OFF_BB1:OFF_BB1 + 1, :]
    h = jnp.dot(z2, w1m, preferred_element_type=jnp.float32) + bb1        # (BN, HIDDEN)
    h = 0.5 * h * (1.0 + jax.lax.erf(h * jnp.float32(_INV_SQRT2)))
    w2m = s32_ref[OFF_W2M:OFF_W2M + HIDDEN, :]
    bb2 = s32_ref[OFF_BB2:OFF_BB2 + 1, :]
    yv = jnp.dot(h, w2m, preferred_element_type=jnp.float32) + bb2        # (BN, DIM)

    o_ref[...] = x + yv                                          # residual 2


def gfnet_block_pallas(x, params):
    """x: (B, N, C) float32. params: dict with precomputed packed operands."""
    Bx, Nx, Cx = x.shape
    x2 = x.reshape(Bx * Nx, Cx)             # wrapper-side flatten (layout plumbing)
    a2, binv = params["A2"], params["BrBi"]
    s32, s128 = params["slab32"], params["slab128"]

    full = lambda arr: pl.BlockSpec(arr.shape, lambda i: (0, 0))

    mm_flops = 2 * (KST * BN * DIM          # forward block DFT
                    + BN * KST * DIM        # fused inverse block DFT
                    + BN * DIM * HIDDEN     # fc1
                    + BN * HIDDEN * DIM)    # fc2
    elem_flops = 30 * BN * DIM + 4 * KST * DIM + 8 * BN * HIDDEN
    cost = pl.CostEstimate(
        flops=int(mm_flops + elem_flops),
        transcendentals=int(BN * HIDDEN + 4 * BN),
        bytes_accessed=int(4 * (2 * x2.size + a2.size + binv.size
                                + s32.size + s128.size)))

    out = pl.pallas_call(
        gfnet_block_kernel,
        out_shape=jax.ShapeDtypeStruct((Bx * Nx, Cx), jnp.float32),
        grid=(1,),
        in_specs=[full(x2), full(a2), full(binv), full(s32), full(s128)],
        out_specs=pl.BlockSpec((Bx * Nx, Cx), lambda i: (0, 0)),
        compiler_params=pltpu.CompilerParams(dimension_semantics=("arbitrary",)),
        cost_estimate=cost,
    )(x2, a2, binv, s32, s128)
    return out.reshape(Bx, Nx, Cx)


# ---------------------------------------------------------------------------
# Parameter setup (plain JAX glue, runs once per weight update):
# real-DFT block matrices, affine folding, constant-slab packing.
# ---------------------------------------------------------------------------
def build_spectral_operators(complex_weight, g1, b1):
    """Returns A2 (KST, BN), BrBi (BN, KST), W1/W2 (KST, DIM) with gamma1 folded,
    and fb_flat (BN, DIM) = filter(beta1) tiled over batch."""
    wc = complex_weight[..., 0] + 1j * complex_weight[..., 1]            # (H, WF, DIM)
    wr = jnp.real(wc).reshape(NF, DIM)
    wi = jnp.imag(wc).reshape(NF, DIM)

    # rfft2 / irfft2 as shared real DFT matrices (channel-independent).
    eye_sp = jnp.eye(N, dtype=jnp.float32).reshape(N, H, W)
    F = jnp.fft.rfft2(eye_sp, axes=(1, 2), norm="ortho").reshape(N, NF)  # (N, NF) complex
    Ar = jnp.real(F).T                                                   # (NF, N)
    Ai = jnp.imag(F).T

    eye_f = jnp.eye(NF, dtype=jnp.complex64).reshape(NF, H, WF)
    Br = jnp.fft.irfft2(eye_f, s=(H, W), axes=(1, 2), norm="ortho").reshape(NF, N).T
    Bi = jnp.fft.irfft2(1j * eye_f, s=(H, W), axes=(1, 2), norm="ortho").reshape(NF, N).T

    # Block-diagonal over the batch -> the whole batch fits in one grid step.
    A2 = jnp.concatenate([block_diag(*([Ar] * B)), block_diag(*([Ai] * B))], axis=0)
    BrBi = jnp.concatenate([block_diag(*([Br] * B)), block_diag(*([Bi] * B))], axis=1)

    # Fold LayerNorm1 gamma into the (channel-diagonal) spectral weight,
    # beta into a precomputed constant bias field fb = filter(beta1).
    wr_g = wr * g1
    wi_g = wi * g1
    W1 = jnp.tile(wr_g, (2 * B, 1))                                      # (KST, DIM)
    W2 = jnp.concatenate([jnp.tile(-wi_g, (B, 1)), jnp.tile(wi_g, (B, 1))], axis=0)

    b1_field = jnp.broadcast_to(b1, (H, W, DIM))
    fb = jnp.fft.irfft2(jnp.fft.rfft2(b1_field, axes=(0, 1), norm="ortho") * wc,
                        s=(H, W), axes=(0, 1), norm="ortho").reshape(N, DIM)
    fb_flat = jnp.tile(fb, (B, 1))                                       # (BN, DIM)

    return (A2.astype(jnp.float32), BrBi.astype(jnp.float32),
            W1.astype(jnp.float32), W2.astype(jnp.float32),
            fb_flat.astype(jnp.float32))


def init_params(key):
    ks = jax.random.split(key, 9)
    cw = 0.02 * jax.random.normal(ks[0], (H, WF, DIM, 2), jnp.float32)
    # Randomized LayerNorm affines so the foldings are actually exercised.
    g1 = 1.0 + 0.1 * jax.random.normal(ks[5], (1, DIM), jnp.float32)
    b1 = 0.1 * jax.random.normal(ks[6], (1, DIM), jnp.float32)
    g2 = 1.0 + 0.1 * jax.random.normal(ks[7], (1, DIM), jnp.float32)
    b2 = 0.1 * jax.random.normal(ks[8], (1, DIM), jnp.float32)
    w1 = 0.05 * jax.random.normal(ks[1], (DIM, HIDDEN), jnp.float32)
    bb1 = 0.05 * jax.random.normal(ks[2], (1, HIDDEN), jnp.float32)
    w2 = 0.05 * jax.random.normal(ks[3], (HIDDEN, DIM), jnp.float32)
    bb2 = 0.05 * jax.random.normal(ks[4], (1, DIM), jnp.float32)

    A2, BrBi, W1, W2, fb_flat = build_spectral_operators(cw, g1, b1)

    # Fold LayerNorm2 affine into fc1.
    w1p = g2.reshape(DIM, 1) * w1                   # (DIM, HIDDEN)
    bb1p = b2 @ w1 + bb1                            # (1, HIDDEN)

    # Pack constants into two row-stacked slabs (static 8-aligned in-kernel slices).
    slab32 = jnp.zeros((S32_ROWS, DIM), jnp.float32)
    slab32 = slab32.at[OFF_W1:OFF_W1 + KST].set(W1)
    slab32 = slab32.at[OFF_W2:OFF_W2 + KST].set(W2)
    slab32 = slab32.at[OFF_FB:OFF_FB + BN].set(fb_flat)
    slab32 = slab32.at[OFF_W2M:OFF_W2M + HIDDEN].set(w2)
    slab32 = slab32.at[OFF_BB2:OFF_BB2 + 1].set(bb2)

    slab128 = jnp.zeros((S128_ROWS, HIDDEN), jnp.float32)
    slab128 = slab128.at[OFF_W1M:OFF_W1M + DIM].set(w1p)
    slab128 = slab128.at[OFF_BB1:OFF_BB1 + 1].set(bb1p)

    return dict(
        complex_weight=cw, g1=g1, b1=b1, g2=g2, b2=b2,
        w1=w1, bb1=bb1, w2=w2, bb2=bb2,
        A2=A2, BrBi=BrBi, slab32=slab32, slab128=slab128,
    )


# ---------------------------------------------------------------------------
# Pure-JAX reference (mirrors the PyTorch forward exactly) for verification.
# ---------------------------------------------------------------------------
def gfnet_block_ref(x, params):
    def ln(v, g, b):
        mu = v.mean(-1, keepdims=True)
        var = ((v - mu) ** 2).mean(-1, keepdims=True)
        return (v - mu) / jnp.sqrt(var + LN_EPS) * g + b

    Bx, Nx, Cx = x.shape
    wc = params["complex_weight"][..., 0] + 1j * params["complex_weight"][..., 1]
    xn = ln(x, params["g1"], params["b1"])
    xh = xn.reshape(Bx, H, W, Cx)
    Xf = jnp.fft.rfft2(xh, axes=(1, 2), norm="ortho") * wc[None]
    filt = jnp.fft.irfft2(Xf, s=(H, W), axes=(1, 2), norm="ortho").reshape(Bx, Nx, Cx)
    x = x + filt
    xn2 = ln(x, params["g2"], params["b2"])
    h = xn2 @ params["w1"] + params["bb1"]
    h = 0.5 * h * (1.0 + jax.scipy.special.erf(h / jnp.sqrt(2.0)))
    y = h @ params["w2"] + params["bb2"]
    return x + y


if __name__ == "__main__":
    key = jax.random.PRNGKey(0)
    kp, kx = jax.random.split(key)
    params = init_params(kp)
    x = jax.random.normal(kx, (B, N, DIM), jnp.float32)

    out = jax.block_until_ready(gfnet_block_pallas(x, params))
    ref = jax.block_until_ready(gfnet_block_ref(x, params))

    assert out.shape == (B, N, DIM)
    err = float(jnp.max(jnp.abs(out - ref)))
    assert jnp.allclose(out, ref, atol=2e-3, rtol=2e-3), err

    print("KERNEL_OK")
</pallas_src>

<mosaic_0001>
module attributes {stable_mosaic.version = 11 : i64} {
  func.func @gfnet_block_kernel(%arg0: i32, %arg1: memref<128x32xf32, #tpu.memory_space<vmem>>, %arg2: memref<160x128xf32, #tpu.memory_space<vmem>>, %arg3: memref<128x160xf32, #tpu.memory_space<vmem>>, %arg4: memref<584x32xf32, #tpu.memory_space<vmem>>, %arg5: memref<40x128xf32, #tpu.memory_space<vmem>>, %arg6: memref<128x32xf32, #tpu.memory_space<vmem>>) attributes {dimension_semantics = [#tpu.dimension_semantics<arbitrary>], iteration_bounds = array<i64: 1>, scalar_prefetch = 0 : i64, scratch_operands = 0 : i64, tpu.core_type = #tpu.core_type<tc>, window_params = [{pipeline_mode = #tpu.pipeline_mode<synchronous>, transform_indices = @transform_0, window_bounds = array<i64: 128, 32>}, {pipeline_mode = #tpu.pipeline_mode<synchronous>, transform_indices = @transform_1, window_bounds = array<i64: 160, 128>}, {pipeline_mode = #tpu.pipeline_mode<synchronous>, transform_indices = @transform_2, window_bounds = array<i64: 128, 160>}, {pipeline_mode = #tpu.pipeline_mode<synchronous>, transform_indices = @transform_3, window_bounds = array<i64: 584, 32>}, {pipeline_mode = #tpu.pipeline_mode<synchronous>, transform_indices = @transform_4, window_bounds = array<i64: 40, 128>}, {pipeline_mode = #tpu.pipeline_mode<synchronous>, transform_indices = @transform_5, window_bounds = array<i64: 128, 32>}]} {
    %c0 = arith.constant 0 : index
    %c0_0 = arith.constant 0 : index
    %0 = vector.load %arg1[%c0, %c0_0] : memref<128x32xf32, #tpu.memory_space<vmem>>, vector<128x32xf32>
    %cst = arith.constant dense<0.000000e+00> : vector<128xf32>
    %1 = vector.multi_reduction <add>, %0, %cst [1] : vector<128x32xf32> to vector<128xf32>
    %2 = vector.shape_cast %1 : vector<128xf32> to vector<128x1xf32>
    %cst_1 = arith.constant 3.200000e+01 : f32
    %3 = vector.broadcast %cst_1 : f32 to vector<128x1xf32>
    %4 = arith.divf %2, %3 : vector<128x1xf32>
    %5 = arith.mulf %0, %0 : vector<128x32xf32>
    %cst_2 = arith.constant dense<0.000000e+00> : vector<128xf32>
    %6 = vector.multi_reduction <add>, %5, %cst_2 [1] : vector<128x32xf32> to vector<128xf32>
    %7 = vector.shape_cast %6 : vector<128xf32> to vector<128x1xf32>
    %cst_3 = arith.constant 3.200000e+01 : f32
    %8 = vector.broadcast %cst_3 : f32 to vector<128x1xf32>
    %9 = arith.divf %7, %8 : vector<128x1xf32>
    %10 = vector.broadcast %4 : vector<128x1xf32> to vector<128x32xf32>
    %11 = arith.subf %0, %10 : vector<128x32xf32>
    %12 = arith.mulf %4, %4 : vector<128x1xf32>
    %13 = arith.subf %9, %12 : vector<128x1xf32>
    %cst_4 = arith.constant 9.99999974E-6 : f32
    %14 = vector.broadcast %cst_4 : f32 to vector<128x1xf32>
    %15 = arith.addf %13, %14 : vector<128x1xf32>
    %16 = math.rsqrt %15 : vector<128x1xf32>
    %17 = vector.broadcast %16 : vector<128x1xf32> to vector<128x32xf32>
    %18 = arith.mulf %11, %17 : vector<128x32xf32>
    %c0_5 = arith.constant 0 : index
    %c0_6 = arith.constant 0 : index
    %19 = vector.load %arg2[%c0_5, %c0_6] : memref<160x128xf32, #tpu.memory_space<vmem>>, vector<160x128xf32>
    %cst_7 = arith.constant dense<0.000000e+00> : vector<160x32xf32>
    %20 = tpu.matmul %19, %18, %cst_7 {dimension_numbers = #tpu.dot_dimension_numbers<[1], [0], [0], [1], [0, 0, 1, 1], [], []>} : vector<160x128xf32>, vector<128x32xf32>, vector<160x32xf32> -> vector<160x32xf32>
    %c0_8 = arith.constant 0 : index
    %c0_9 = arith.constant 0 : index
    %21 = vector.load %arg4[%c0_8, %c0_9] : memref<584x32xf32, #tpu.memory_space<vmem>>, vector<160x32xf32>
    %c160 = arith.constant 160 : index
    %c0_10 = arith.constant 0 : index
    %22 = vector.load %arg4[%c160, %c0_10] : memref<584x32xf32, #tpu.memory_space<vmem>>, vector<160x32xf32>
    %23 = arith.mulf %20, %21 : vector<160x32xf32>
    %c80_i32 = arith.constant 80 : i32
    %24 = tpu.dynamic_rotate %20 by %c80_i32 dim 0 : vector<160x32xf32>, i32 -> vector<160x32xf32>
    %25 = arith.mulf %24, %22 : vector<160x32xf32>
    %26 = arith.addf %23, %25 : vector<160x32xf32>
    %c320 = arith.constant 320 : index
    %c0_11 = arith.constant 0 : index
    %27 = vector.load %arg4[%c320, %c0_11] : memref<584x32xf32, #tpu.memory_space<vmem>>, vector<128x32xf32>
    %c0_12 = arith.constant 0 : index
    %c0_13 = arith.constant 0 : index
    %28 = vector.load %arg3[%c0_12, %c0_13] : memref<128x160xf32, #tpu.memory_space<vmem>>, vector<128x160xf32>
    %cst_14 = arith.constant dense<0.000000e+00> : vector<128x32xf32>
    %29 = tpu.matmul %28, %26, %cst_14 {dimension_numbers = #tpu.dot_dimension_numbers<[1], [0], [0], [1], [0, 0, 1, 1], [], []>} : vector<128x160xf32>, vector<160x32xf32>, vector<128x32xf32> -> vector<128x32xf32>
    %30 = arith.addf %0, %29 : vector<128x32xf32>
    %31 = arith.addf %30, %27 : vector<128x32xf32>
    %cst_15 = arith.constant dense<0.000000e+00> : vector<128xf32>
    %32 = vector.multi_reduction <add>, %31, %cst_15 [1] : vector<128x32xf32> to vector<128xf32>
    %33 = vector.shape_cast %32 : vector<128xf32> to vector<128x1xf32>
    %cst_16 = arith.constant 3.200000e+01 : f32
    %34 = vector.broadcast %cst_16 : f32 to vector<128x1xf32>
    %35 = arith.divf %33, %34 : vector<128x1xf32>
    %36 = arith.mulf %31, %31 : vector<128x32xf32>
    %cst_17 = arith.constant dense<0.000000e+00> : vector<128xf32>
    %37 = vector.multi_reduction <add>, %36, %cst_17 [1] : vector<128x32xf32> to vector<128xf32>
    %38 = vector.shape_cast %37 : vector<128xf32> to vector<128x1xf32>
    %cst_18 = arith.constant 3.200000e+01 : f32
    %39 = vector.broadcast %cst_18 : f32 to vector<128x1xf32>
    %40 = arith.divf %38, %39 : vector<128x1xf32>
    %41 = vector.broadcast %35 : vector<128x1xf32> to vector<128x32xf32>
    %42 = arith.subf %31, %41 : vector<128x32xf32>
    %43 = arith.mulf %35, %35 : vector<128x1xf32>
    %44 = arith.subf %40, %43 : vector<128x1xf32>
    %cst_19 = arith.constant 9.99999974E-6 : f32
    %45 = vector.broadcast %cst_19 : f32 to vector<128x1xf32>
    %46 = arith.addf %44, %45 : vector<128x1xf32>
    %47 = math.rsqrt %46 : vector<128x1xf32>
    %48 = vector.broadcast %47 : vector<128x1xf32> to vector<128x32xf32>
    %49 = arith.mulf %42, %48 : vector<128x32xf32>
    %c0_20 = arith.constant 0 : index
    %c0_21 = arith.constant 0 : index
    %50 = vector.load %arg5[%c0_20, %c0_21] : memref<40x128xf32, #tpu.memory_space<vmem>>, vector<32x128xf32>
    %c32 = arith.constant 32 : index
    %c0_22 = arith.constant 0 : index
    %51 = vector.load %arg5[%c32, %c0_22] : memref<40x128xf32, #tpu.memory_space<vmem>>, vector<1x128xf32>
    %cst_23 = arith.constant dense<0.000000e+00> : vector<128x128xf32>
    %52 = tpu.matmul %49, %50, %cst_23 {dimension_numbers = #tpu.dot_dimension_numbers<[1], [0], [0], [1], [0, 0, 1, 1], [], []>} : vector<128x32xf32>, vector<32x128xf32>, vector<128x128xf32> -> vector<128x128xf32>
    %53 = vector.broadcast %51 : vector<1x128xf32> to vector<128x128xf32>
    %54 = arith.addf %52, %53 : vector<128x128xf32>
    %cst_24 = arith.constant 5.000000e-01 : f32
    %55 = vector.broadcast %cst_24 : f32 to vector<128x128xf32>
    %56 = arith.mulf %55, %54 : vector<128x128xf32>
    %cst_25 = arith.constant 0.707106769 : f32
    %57 = vector.broadcast %cst_25 : f32 to vector<128x128xf32>
    %58 = arith.mulf %54, %57 : vector<128x128xf32>
    %59 = math.erf %58 : vector<128x128xf32>
    %cst_26 = arith.constant 1.000000e+00 : f32
    %60 = vector.broadcast %cst_26 : f32 to vector<128x128xf32>
    %61 = arith.addf %60, %59 : vector<128x128xf32>
    %62 = arith.mulf %56, %61 : vector<128x128xf32>
    %c448 = arith.constant 448 : index
    %c0_27 = arith.constant 0 : index
    %63 = vector.load %arg4[%c448, %c0_27] : memref<584x32xf32, #tpu.memory_space<vmem>>, vector<128x32xf32>
    %c576 = arith.constant 576 : index
    %c0_28 = arith.constant 0 : index
    %64 = vector.load %arg4[%c576, %c0_28] : memref<584x32xf32, #tpu.memory_space<vmem>>, vector<1x32xf32>
    %cst_29 = arith.constant dense<0.000000e+00> : vector<128x32xf32>
    %65 = tpu.matmul %62, %63, %cst_29 {dimension_numbers = #tpu.dot_dimension_numbers<[1], [0], [0], [1], [0, 0, 1, 1], [], []>} : vector<128x128xf32>, vector<128x32xf32>, vector<128x32xf32> -> vector<128x32xf32>
    %66 = vector.broadcast %64 : vector<1x32xf32> to vector<128x32xf32>
    %67 = arith.addf %65, %66 : vector<128x32xf32>
    %68 = arith.addf %31, %67 : vector<128x32xf32>
    %c0_30 = arith.constant 0 : index
    %c0_31 = arith.constant 0 : index
    %69 = vector.load %arg6[%c0_30, %c0_31] : memref<128x32xf32, #tpu.memory_space<vmem>>, vector<128x32xf32>
    tpu.vector_store %arg6[%c0_30, %c0_31], %68 {strides = array<i32>} : memref<128x32xf32, #tpu.memory_space<vmem>>, vector<128x32xf32>,
    return
  }
  func.func @transform_0(%arg0: i32) -> (i32, i32) {
    %c0_i32 = arith.constant 0 : i32
    %c0_i32_0 = arith.constant 0 : i32
    %c0_i32_1 = arith.constant 0 : i32
    return %c0_i32, %c0_i32_0 : i32, i32
  }
  func.func @transform_1(%arg0: i32) -> (i32, i32) {
    %c0_i32 = arith.constant 0 : i32
    %c0_i32_0 = arith.constant 0 : i32
    %c0_i32_1 = arith.constant 0 : i32
    return %c0_i32, %c0_i32_0 : i32, i32
  }
  func.func @transform_2(%arg0: i32) -> (i32, i32) {
    %c0_i32 = arith.constant 0 : i32
    %c0_i32_0 = arith.constant 0 : i32
    %c0_i32_1 = arith.constant 0 : i32
    return %c0_i32, %c0_i32_0 : i32, i32
  }
  func.func @transform_3(%arg0: i32) -> (i32, i32) {
    %c0_i32 = arith.constant 0 : i32
    %c0_i32_0 = arith.constant 0 : i32
    %c0_i32_1 = arith.constant 0 : i32
    return %c0_i32, %c0_i32_0 : i32, i32
  }
  func.func @transform_4(%arg0: i32) -> (i32, i32) {
    %c0_i32 = arith.constant 0 : i32
    %c0_i32_0 = arith.constant 0 : i32
    %c0_i32_1 = arith.constant 0 : i32
    return %c0_i32, %c0_i32_0 : i32, i32
  }
  func.func @transform_5(%arg0: i32) -> (i32, i32) {
    %c0_i32 = arith.constant 0 : i32
    %c0_i32_0 = arith.constant 0 : i32
    %c0_i32_1 = arith.constant 0 : i32
    return %c0_i32, %c0_i32_0 : i32, i32
  }
}

</mosaic_0001>

<llo_original>
// kernel: tpu_custom_call.1
$region0: #{tpu_custom_call.1}
  #allocation0 [shape = 'u32[]', space=smem, size = 0x4, offset = 0x4, fixed_abs, tag = 'smem constant byte address 0x4 - core index']
  #allocation1 [shape = 'u32[144,128]{1,0:T(1,128)}', space=vmem, size = 0x12000, scoped, tag = 'internal scratch']
  %s0 = inlined_call_operand.vmem [shape: f32[128,32], index: 0, kind: input, shape index: {}]
  %s1 = inlined_call_operand.vmem [shape: f32[160,128], index: 1, kind: input, shape index: {}]
  %s2 = inlined_call_operand.vmem [shape: f32[128,160], index: 2, kind: input, shape index: {}]
  %s3 = inlined_call_operand.vmem [shape: f32[584,32], index: 3, kind: input, shape index: {}]
  %s4 = inlined_call_operand.vmem [shape: f32[40,128], index: 4, kind: input, shape index: {}]
  %s5 = inlined_call_operand.vmem [shape: f32[128,32], index: 5, kind: output, shape index: {}]
  %s6 = sld [smem:[#allocation0]]
  $region30: #{tpu_custom_call.1} parent=0
    _
  %s8 = ssub.s32 1, %s6
  %s9 = scalar_select 0, %s8, %s6
  // Predicated region
  $region2: #{tpu_custom_call.1} parent=0 // pred_check
    _
  $region3: #{tpu_custom_call.1} parent=0 // pred_check_branch
    %11 = sbr.rel (0) target = $region5
  $region4: #{tpu_custom_call.1} parent=0 // pred_region
    _
  $region5: #{tpu_custom_call.1} parent=0 // pred_fallthru
    _
  // Predicated region
  $region6: #{tpu_custom_call.1} parent=0 // pred_check
    _
  $region7: #{tpu_custom_call.1} parent=0 // pred_check_branch
    %13 = sbr.rel (0) target = $region9
  $region8: #{tpu_custom_call.1} parent=0 // pred_region
    _
  $region9: #{tpu_custom_call.1} parent=0 // pred_fallthru
    _
  // Predicated region
  $region10: #{tpu_custom_call.1} parent=0 // pred_check
    _
  $region11: #{tpu_custom_call.1} parent=0 // pred_check_branch
    %15 = sbr.rel (0) target = $region13
  $region12: #{tpu_custom_call.1} parent=0 // pred_region
    _
  $region13: #{tpu_custom_call.1} parent=0 // pred_fallthru
    _
  // Predicated region
  $region14: #{tpu_custom_call.1} parent=0 // pred_check
    _
  $region15: #{tpu_custom_call.1} parent=0 // pred_check_branch
    %17 = sbr.rel (0) target = $region17
  $region16: #{tpu_custom_call.1} parent=0 // pred_region
    _
  $region17: #{tpu_custom_call.1} parent=0 // pred_fallthru
    _
  // Predicated region
  $region18: #{tpu_custom_call.1} parent=0 // pred_check
    _
  $region19: #{tpu_custom_call.1} parent=0 // pred_check_branch
    %19 = sbr.rel (0) target = $region21
  $region20: #{tpu_custom_call.1} parent=0 // pred_region
    _
  $region21: #{tpu_custom_call.1} parent=0 // pred_fallthru
    _
  %v20 = vld [vmem:[%s0] sm:$0xff]
  %v21 = vld [vmem:[%s0 + $0x8] sm:$0xff]
  %v22 = vld [vmem:[%s0 + $0x10] sm:$0xff]
  %v23 = vld [vmem:[%s0 + $0x18] sm:$0xff]
  %v24 = vld [vmem:[%s0 + $0x20] sm:$0xff]
  %v25 = vld [vmem:[%s0 + $0x28] sm:$0xff]
  %v26 = vld [vmem:[%s0 + $0x30] sm:$0xff]
  %v27 = vld [vmem:[%s0 + $0x38] sm:$0xff]
  %v28 = vld [vmem:[%s0 + $0x40] sm:$0xff]
  %v29 = vld [vmem:[%s0 + $0x48] sm:$0xff]
  %v30 = vld [vmem:[%s0 + $0x50] sm:$0xff]
  %v31 = vld [vmem:[%s0 + $0x58] sm:$0xff]
  %v32 = vld [vmem:[%s0 + $0x60] sm:$0xff]
  %v33 = vld [vmem:[%s0 + $0x68] sm:$0xff]
  %v34 = vld [vmem:[%s0 + $0x70] sm:$0xff]
  %v35 = vld [vmem:[%s0 + $0x78] sm:$0xff]
  %vm36 = vcmask 261120
  %v37 = vsel %vm36, %v20, 0.0
  %38 = vadd.xlane.f32.xlu0 %v37
  %v39 = vpop.xlane.xlu0 %38
  %v40 = vsel %vm36, %v21, 0.0
  %41 = vadd.xlane.f32.xlu0 %v40
  %v42 = vpop.xlane.xlu0 %41
  %v43 = vsel %vm36, %v22, 0.0
  %44 = vadd.xlane.f32.xlu0 %v43
  %v45 = vpop.xlane.xlu0 %44
  %v46 = vsel %vm36, %v23, 0.0
  %47 = vadd.xlane.f32.xlu0 %v46
  %v48 = vpop.xlane.xlu0 %47
  %v49 = vsel %vm36, %v24, 0.0
  %50 = vadd.xlane.f32.xlu0 %v49
  %v51 = vpop.xlane.xlu0 %50
  %v52 = vsel %vm36, %v25, 0.0
  %53 = vadd.xlane.f32.xlu0 %v52
  %v54 = vpop.xlane.xlu0 %53
  %v55 = vsel %vm36, %v26, 0.0
  %56 = vadd.xlane.f32.xlu0 %v55
  %v57 = vpop.xlane.xlu0 %56
  %v58 = vsel %vm36, %v27, 0.0
  %59 = vadd.xlane.f32.xlu0 %v58
  %v60 = vpop.xlane.xlu0 %59
  %v61 = vsel %vm36, %v28, 0.0
  %62 = vadd.xlane.f32.xlu0 %v61
  %v63 = vpop.xlane.xlu0 %62
  %v64 = vsel %vm36, %v29, 0.0
  %65 = vadd.xlane.f32.xlu0 %v64
  %v66 = vpop.xlane.xlu0 %65
  %v67 = vsel %vm36, %v30, 0.0
  %68 = vadd.xlane.f32.xlu0 %v67
  %v69 = vpop.xlane.xlu0 %68
  %v70 = vsel %vm36, %v31, 0.0
  %71 = vadd.xlane.f32.xlu0 %v70
  %v72 = vpop.xlane.xlu0 %71
  %v73 = vsel %vm36, %v32, 0.0
  %74 = vadd.xlane.f32.xlu0 %v73
  %v75 = vpop.xlane.xlu0 %74
  %v76 = vsel %vm36, %v33, 0.0
  %77 = vadd.xlane.f32.xlu0 %v76
  %v78 = vpop.xlane.xlu0 %77
  %v79 = vsel %vm36, %v34, 0.0
  %80 = vadd.xlane.f32.xlu0 %v79
  %v81 = vpop.xlane.xlu0 %80
  %v82 = vsel %vm36, %v35, 0.0
  %83 = vadd.xlane.f32.xlu0 %v82
  %v84 = vpop.xlane.xlu0 %83
  %v85 = vrcp.pop 32.0
  %v86 = vmul.f32 %v39, %v85
  %v87 = vmul.f32 %v42, %v85
  %v88 = vmul.f32 %v45, %v85
  %v89 = vmul.f32 %v48, %v85
  %v90 = vmul.f32 %v51, %v85
  %v91 = vmul.f32 %v54, %v85
  %v92 = vmul.f32 %v57, %v85
  %v93 = vmul.f32 %v60, %v85
  %v94 = vmul.f32 %v63, %v85
  %v95 = vmul.f32 %v66, %v85
  %v96 = vmul.f32 %v69, %v85
  %v97 = vmul.f32 %v72, %v85
  %v98 = vmul.f32 %v75, %v85
  %v99 = vmul.f32 %v78, %v85
  %v100 = vmul.f32 %v81, %v85
  %v101 = vmul.f32 %v84, %v85
  %v102 = vmul.f32 %v20, %v20
  %v103 = vmul.f32 %v21, %v21
  %v104 = vmul.f32 %v22, %v22
  %v105 = vmul.f32 %v23, %v23
  %v106 = vmul.f32 %v24, %v24
  %v107 = vmul.f32 %v25, %v25
  %v108 = vmul.f32 %v26, %v26
  %v109 = vmul.f32 %v27, %v27
  %v110 = vmul.f32 %v28, %v28
  %v111 = vmul.f32 %v29, %v29
  %v112 = vmul.f32 %v30, %v30
  %v113 = vmul.f32 %v31, %v31
  %v114 = vmul.f32 %v32, %v32
  %v115 = vmul.f32 %v33, %v33
  %v116 = vmul.f32 %v34, %v34
  %v117 = vmul.f32 %v35, %v35
  %v118 = vsel %vm36, %v102, 0.0
  %119 = vadd.xlane.f32.xlu0 %v118
  %v120 = vpop.xlane.xlu0 %119
  %v121 = vsel %vm36, %v103, 0.0
  %122 = vadd.xlane.f32.xlu0 %v121
  %v123 = vpop.xlane.xlu0 %122
  %v124 = vsel %vm36, %v104, 0.0
  %125 = vadd.xlane.f32.xlu0 %v124
  %v126 = vpop.xlane.xlu0 %125
  %v127 = vsel %vm36, %v105, 0.0
  %128 = vadd.xlane.f32.xlu0 %v127
  %v129 = vpop.xlane.xlu0 %128
  %v130 = vsel %vm36, %v106, 0.0
  %131 = vadd.xlane.f32.xlu0 %v130
  %v132 = vpop.xlane.xlu0 %131
  %v133 = vsel %vm36, %v107, 0.0
  %134 = vadd.xlane.f32.xlu0 %v133
  %v135 = vpop.xlane.xlu0 %134
  %v136 = vsel %vm36, %v108, 0.0
  %137 = vadd.xlane.f32.xlu0 %v136
  %v138 = vpop.xlane.xlu0 %137
  %v139 = vsel %vm36, %v109, 0.0
  %140 = vadd.xlane.f32.xlu0 %v139
  %v141 = vpop.xlane.xlu0 %140
  %v142 = vsel %vm36, %v110, 0.0
  %143 = vadd.xlane.f32.xlu0 %v142
  %v144 = vpop.xlane.xlu0 %143
  %v145 = vsel %vm36, %v111, 0.0
  %146 = vadd.xlane.f32.xlu0 %v145
  %v147 = vpop.xlane.xlu0 %146
  %v148 = vsel %vm36, %v112, 0.0
  %149 = vadd.xlane.f32.xlu0 %v148
  %v150 = vpop.xlane.xlu0 %149
  %v151 = vsel %vm36, %v113, 0.0
  %152 = vadd.xlane.f32.xlu0 %v151
  %v153 = vpop.xlane.xlu0 %152
  %v154 = vsel %vm36, %v114, 0.0
  %155 = vadd.xlane.f32.xlu0 %v154
  %v156 = vpop.xlane.xlu0 %155
  %v157 = vsel %vm36, %v115, 0.0
  %158 = vadd.xlane.f32.xlu0 %v157
  %v159 = vpop.xlane.xlu0 %158
  %v160 = vsel %vm36, %v116, 0.0
  %161 = vadd.xlane.f32.xlu0 %v160
  %v162 = vpop.xlane.xlu0 %161
  %v163 = vsel %vm36, %v117, 0.0
  %164 = vadd.xlane.f32.xlu0 %v163
  %v165 = vpop.xlane.xlu0 %164
  %v166 = vmul.f32 %v120, %v85
  %v167 = vmul.f32 %v123, %v85
  %v168 = vmul.f32 %v126, %v85
  %v169 = vmul.f32 %v129, %v85
  %v170 = vmul.f32 %v132, %v85
  %v171 = vmul.f32 %v135, %v85
  %v172 = vmul.f32 %v138, %v85
  %v173 = vmul.f32 %v141, %v85
  %v174 = vmul.f32 %v144, %v85
  %v175 = vmul.f32 %v147, %v85
  %v176 = vmul.f32 %v150, %v85
  %v177 = vmul.f32 %v153, %v85
  %v178 = vmul.f32 %v156, %v85
  %v179 = vmul.f32 %v159, %v85
  %v180 = vmul.f32 %v162, %v85
  %v181 = vmul.f32 %v165, %v85
  %v182 = vsub.f32 %v20, %v86
  %v183 = vsub.f32 %v21, %v87
  %v184 = vsub.f32 %v22, %v88
  %v185 = vsub.f32 %v23, %v89
  %v186 = vsub.f32 %v24, %v90
  %v187 = vsub.f32 %v25, %v91
  %v188 = vsub.f32 %v26, %v92
  %v189 = vsub.f32 %v27, %v93
  %v190 = vsub.f32 %v28, %v94
  %v191 = vsub.f32 %v29, %v95
  %v192 = vsub.f32 %v30, %v96
  %v193 = vsub.f32 %v31, %v97
  %v194 = vsub.f32 %v32, %v98
  %v195 = vsub.f32 %v33, %v99
  %v196 = vsub.f32 %v34, %v100
  %v197 = vsub.f32 %v35, %v101
  %v198 = vmul.f32 %v86, %v86
  %v199 = vmul.f32 %v87, %v87
  %v200 = vmul.f32 %v88, %v88
  %v201 = vmul.f32 %v89, %v89
  %v202 = vmul.f32 %v90, %v90
  %v203 = vmul.f32 %v91, %v91
  %v204 = vmul.f32 %v92, %v92
  %v205 = vmul.f32 %v93, %v93
  %v206 = vmul.f32 %v94, %v94
  %v207 = vmul.f32 %v95, %v95
  %v208 = vmul.f32 %v96, %v96
  %v209 = vmul.f32 %v97, %v97
  %v210 = vmul.f32 %v98, %v98
  %v211 = vmul.f32 %v99, %v99
  %v212 = vmul.f32 %v100, %v100
  %v213 = vmul.f32 %v101, %v101
  %v214 = vsub.f32 %v166, %v198
  %v215 = vsub.f32 %v167, %v199
  %v216 = vsub.f32 %v168, %v200
  %v217 = vsub.f32 %v169, %v201
  %v218 = vsub.f32 %v170, %v202
  %v219 = vsub.f32 %v171, %v203
  %v220 = vsub.f32 %v172, %v204
  %v221 = vsub.f32 %v173, %v205
  %v222 = vsub.f32 %v174, %v206
  %v223 = vsub.f32 %v175, %v207
  %v224 = vsub.f32 %v176, %v208
  %v225 = vsub.f32 %v177, %v209
  %v226 = vsub.f32 %v178, %v210
  %v227 = vsub.f32 %v179, %v211
  %v228 = vsub.f32 %v180, %v212
  %v229 = vsub.f32 %v181, %v213
  %v230 = vadd.f32 %v214, 1e-05
  %v231 = vadd.f32 %v215, 1e-05
  %v232 = vadd.f32 %v216, 1e-05
  %v233 = vadd.f32 %v217, 1e-05
  %v234 = vadd.f32 %v218, 1e-05
  %v235 = vadd.f32 %v219, 1e-05
  %v236 = vadd.f32 %v220, 1e-05
  %v237 = vadd.f32 %v221, 1e-05
  %v238 = vadd.f32 %v222, 1e-05
  %v239 = vadd.f32 %v223, 1e-05
  %v240 = vadd.f32 %v224, 1e-05
  %v241 = vadd.f32 %v225, 1e-05
  %v242 = vadd.f32 %v226, 1e-05
  %v243 = vadd.f32 %v227, 1e-05
  %v244 = vadd.f32 %v228, 1e-05
  %v245 = vadd.f32 %v229, 1e-05
  %v246 = vrsqrt.pop %v230
  %v247 = vrsqrt.pop %v231
  %v248 = vrsqrt.pop %v232
  %v249 = vrsqrt.pop %v233
  %v250 = vrsqrt.pop %v234
  %v251 = vrsqrt.pop %v235
  %v252 = vrsqrt.pop %v236
  %v253 = vrsqrt.pop %v237
  %v254 = vrsqrt.pop %v238
  %v255 = vrsqrt.pop %v239
  %v256 = vrsqrt.pop %v240
  %v257 = vrsqrt.pop %v241
  %v258 = vrsqrt.pop %v242
  %v259 = vrsqrt.pop %v243
  %v260 = vrsqrt.pop %v244
  %v261 = vrsqrt.pop %v245
  %v262 = vmul.f32 %v182, %v246
  %v263 = vmul.f32 %v183, %v247
  %v264 = vmul.f32 %v184, %v248
  %v265 = vmul.f32 %v185, %v249
  %v266 = vmul.f32 %v186, %v250
  %v267 = vmul.f32 %v187, %v251
  %v268 = vmul.f32 %v188, %v252
  %v269 = vmul.f32 %v189, %v253
  %v270 = vmul.f32 %v190, %v254
  %v271 = vmul.f32 %v191, %v255
  %v272 = vmul.f32 %v192, %v256
  %v273 = vmul.f32 %v193, %v257
  %v274 = vmul.f32 %v194, %v258
  %v275 = vmul.f32 %v195, %v259
  %v276 = vmul.f32 %v196, %v260
  %v277 = vmul.f32 %v197, %v261
  %v278 = vld [vmem:[%s1] sm:$0xff]
  %v279 = vld [vmem:[%s1 + $0x8] sm:$0xff]
  %v280 = vld [vmem:[%s1 + $0x10] sm:$0xff]
  %v281 = vld [vmem:[%s1 + $0x18] sm:$0xff]
  %v282 = vld [vmem:[%s1 + $0x20] sm:$0xff]
  %v283 = vld [vmem:[%s1 + $0x28] sm:$0xff]
  %v284 = vld [vmem:[%s1 + $0x30] sm:$0xff]
  %v285 = vld [vmem:[%s1 + $0x38] sm:$0xff]
  %v286 = vld [vmem:[%s1 + $0x40] sm:$0xff]
  %v287 = vld [vmem:[%s1 + $0x48] sm:$0xff]
  %v288 = vld [vmem:[%s1 + $0x50] sm:$0xff]
  %v289 = vld [vmem:[%s1 + $0x58] sm:$0xff]
  %v290 = vld [vmem:[%s1 + $0x60] sm:$0xff]
  %v291 = vld [vmem:[%s1 + $0x68] sm:$0xff]
  %v292 = vld [vmem:[%s1 + $0x70] sm:$0xff]
  %v293 = vld [vmem:[%s1 + $0x78] sm:$0xff]
  %v294 = vld [vmem:[%s1 + $0x80] sm:$0xff]
  %v295 = vld [vmem:[%s1 + $0x88] sm:$0xff]
  %v296 = vld [vmem:[%s1 + $0x90] sm:$0xff]
  %v297 = vld [vmem:[%s1 + $0x98] sm:$0xff]
  %298 = vmatprep.subr.mxu0 0.0
  %299 = vmatpush1.msra.mxu0 %v262
  %300 = vmatprep.subr.mxu0 0.0
  %301 = vmatpush1.msra.mxu0 %v263
  %302 = vmatprep.subr.mxu0 0.0
  %303 = vmatpush1.msra.mxu0 %v264
  %304 = vmatprep.subr.mxu0 0.0
  %305 = vmatpush1.msra.mxu0 %v265
  %306 = vmatprep.subr.mxu0 0.0
  %307 = vmatpush1.msra.mxu0 %v266
  %308 = vmatprep.subr.mxu0 0.0
  %309 = vmatpush1.msra.mxu0 %v267
  %310 = vmatprep.subr.mxu0 0.0
  %311 = vmatpush1.msra.mxu0 %v268
  %312 = vmatprep.subr.mxu0 0.0
  %313 = vmatpush1.msra.mxu0 %v269
  %314 = vmatprep.subr.mxu0 0.0
  %315 = vmatpush1.msra.mxu0 %v270
  %316 = vmatprep.subr.mxu0 0.0
  %317 = vmatpush1.msra.mxu0 %v271
  %318 = vmatprep.subr.mxu0 0.0
  %319 = vmatpush1.msra.mxu0 %v272
  %320 = vmatprep.subr.mxu0 0.0
  %321 = vmatpush1.msra.mxu0 %v273
  %322 = vmatprep.subr.mxu0 0.0
  %323 = vmatpush1.msra.mxu0 %v274
  %324 = vmatprep.subr.mxu0 0.0
  %325 = vmatpush1.msra.mxu0 %v275
  %326 = vmatprep.subr.mxu0 0.0
  %327 = vmatpush1.msra.mxu0 %v276
  %328 = vmatprep.subr.mxu0 0.0
  %329 = vmatpush1.msra.mxu0 %v277
  %330 = vmatprep.subr.mxu0 0.0
  %331 = vmatpush1.msra.mxu0 0.0
  %332 = vmatprep.subr.mxu0 0.0
  %333 = vmatpush1.msra.mxu0 0.0
  %334 = vmatprep.subr.mxu0 0.0
  %335 = vmatpush1.msra.mxu0 0.0
  %336 = vmatprep.subr.mxu0 0.0
  %337 = vmatpush1.msra.mxu0 0.0
  %338 = vmatprep.subr.mxu0 0.0
  %339 = vmatpush1.msra.mxu0 0.0
  %340 = vmatprep.subr.mxu0 0.0
  %341 = vmatpush1.msra.mxu0 0.0
  %342 = vmatprep.subr.mxu0 0.0
  %343 = vmatpush1.msra.mxu0 0.0
  %344 = vmatprep.subr.mxu0 0.0
  %345 = vmatpush1.msra.mxu0 0.0
  %346 = vmatprep.subr.mxu0 0.0
  %347 = vmatpush1.msra.mxu0 0.0
  %348 = vmatprep.subr.mxu0 0.0
  %349 = vmatpush1.msra.mxu0 0.0
  %350 = vmatprep.subr.mxu0 0.0
  %351 = vmatpush1.msra.mxu0 0.0
  %352 = vmatprep.subr.mxu0 0.0
  %353 = vmatpush1.msra.mxu0 0.0
  %354 = vmatprep.subr.mxu0 0.0
  %355 = vmatpush1.msra.mxu0 0.0
  %356 = vmatprep.subr.mxu0 0.0
  %357 = vmatpush1.msra.mxu0 0.0
  %358 = vmatprep.subr.mxu0 0.0
  %359 = vmatpush1.msra.mxu0 0.0
  %360 = vmatprep.subr.mxu0 0.0
  %361 = vmatpush1.msra.mxu0 0.0
  %362 = vmatprep.mubr.f32.mxu0 0.0
  %363 = vmatmul.mubr.f32.gmra.mrb[0].mxu0 %v278
  %v364 = vpop.f32.mrb[0].mxu0
  %v365 = vadd.f32 0.0, %v364
  %v366 = vpop.f32.mrb[0].mxu0
  %367 = vmatprep.mubr.f32.mxu0 0.0
  %368 = vmatmul.mubr.f32.gmra.mrb[0].mxu0 %v279
  %v369 = vpop.f32.mrb[0].mxu0
  %v370 = vadd.f32 0.0, %v369
  %v371 = vpop.f32.mrb[0].mxu0
  %372 = vmatprep.mubr.f32.mxu0 0.0
  %373 = vmatmul.mubr.f32.gmra.mrb[0].mxu0 %v280
  %v374 = vpop.f32.mrb[0].mxu0
  %v375 = vadd.f32 0.0, %v374
  %v376 = vpop.f32.mrb[0].mxu0
  %377 = vmatprep.mubr.f32.mxu0 0.0
  %378 = vmatmul.mubr.f32.gmra.mrb[0].mxu0 %v281
  %v379 = vpop.f32.mrb[0].mxu0
  %v380 = vadd.f32 0.0, %v379
  %v381 = vpop.f32.mrb[0].mxu0
  %382 = vmatprep.mubr.f32.mxu0 0.0
  %383 = vmatmul.mubr.f32.gmra.mrb[0].mxu0 %v282
  %v384 = vpop.f32.mrb[0].mxu0
  %v385 = vadd.f32 0.0, %v384
  %v386 = vpop.f32.mrb[0].mxu0
  %387 = vmatprep.mubr.f32.mxu0 0.0
  %388 = vmatmul.mubr.f32.gmra.mrb[0].mxu0 %v283
  %v389 = vpop.f32.mrb[0].mxu0
  %v390 = vadd.f32 0.0, %v389
  %v391 = vpop.f32.mrb[0].mxu0
  %392 = vmatprep.mubr.f32.mxu0 0.0
  %393 = vmatmul.mubr.f32.gmra.mrb[0].mxu0 %v284
  %v394 = vpop.f32.mrb[0].mxu0
  %v395 = vadd.f32 0.0, %v394
  %v396 = vpop.f32.mrb[0].mxu0
  %397 = vmatprep.mubr.f32.mxu0 0.0
  %398 = vmatmul.mubr.f32.gmra.mrb[0].mxu0 %v285
  %v399 = vpop.f32.mrb[0].mxu0
  %v400 = vadd.f32 0.0, %v399
  %v401 = vpop.f32.mrb[0].mxu0
  %402 = vmatprep.mubr.f32.mxu0 0.0
  %403 = vmatmul.mubr.f32.gmra.mrb[0].mxu0 %v286
  %v404 = vpop.f32.mrb[0].mxu0
  %v405 = vadd.f32 0.0, %v404
  %v406 = vpop.f32.mrb[0].mxu0
  %407 = vmatprep.mubr.f32.mxu0 0.0
  %408 = vmatmul.mubr.f32.gmra.mrb[0].mxu0 %v287
  %v409 = vpop.f32.mrb[0].mxu0
  %v410 = vadd.f32 0.0, %v409
  %v411 = vpop.f32.mrb[0].mxu0
  %412 = vmatprep.mubr.f32.mxu0 0.0
  %413 = vmatmul.mubr.f32.gmra.mrb[0].mxu0 %v288
  %v414 = vpop.f32.mrb[0].mxu0
  %v415 = vadd.f32 0.0, %v414
  %v416 = vpop.f32.mrb[0].mxu0
  %417 = vmatprep.mubr.f32.mxu0 0.0
  %418 = vmatmul.mubr.f32.gmra.mrb[0].mxu0 %v289
  %v419 = vpop.f32.mrb[0].mxu0
  %v420 = vadd.f32 0.0, %v419
  %v421 = vpop.f32.mrb[0].mxu0
  %422 = vmatprep.mubr.f32.mxu0 0.0
  %423 = vmatmul.mubr.f32.gmra.mrb[0].mxu0 %v290
  %v424 = vpop.f32.mrb[0].mxu0
  %v425 = vadd.f32 0.0, %v424
  %v426 = vpop.f32.mrb[0].mxu0
  %427 = vmatprep.mubr.f32.mxu0 0.0
  %428 = vmatmul.mubr.f32.gmra.mrb[0].mxu0 %v291
  %v429 = vpop.f32.mrb[0].mxu0
  %v430 = vadd.f32 0.0, %v429
  %v431 = vpop.f32.mrb[0].mxu0
  %432 = vmatprep.mubr.f32.mxu0 0.0
  %433 = vmatmul.mubr.f32.gmra.mrb[0].mxu0 %v292
  %v434 = vpop.f32.mrb[0].mxu0
  %v435 = vadd.f32 0.0, %v434
  %v436 = vpop.f32.mrb[0].mxu0
  %437 = vmatprep.mubr.f32.mxu0 0.0
  %438 = vmatmul.mubr.f32.gmra.mrb[0].mxu0 %v293
  %v439 = vpop.f32.mrb[0].mxu0
  %v440 = vadd.f32 0.0, %v439
  %v441 = vpop.f32.mrb[0].mxu0
  %442 = vmatprep.mubr.f32.mxu0 0.0
  %443 = vmatmul.mubr.f32.gmra.mrb[0].mxu0 %v294
  %v444 = vpop.f32.mrb[0].mxu0
  %v445 = vadd.f32 0.0, %v444
  %v446 = vpop.f32.mrb[0].mxu0
  %447 = vmatprep.mubr.f32.mxu0 0.0
  %448 = vmatmul.mubr.f32.gmra.mrb[0].mxu0 %v295
  %v449 = vpop.f32.mrb[0].mxu0
  %v450 = vadd.f32 0.0, %v449
  %v451 = vpop.f32.mrb[0].mxu0
  %452 = vmatprep.mubr.f32.mxu0 0.0
  %453 = vmatmul.mubr.f32.gmra.mrb[0].mxu0 %v296
  %v454 = vpop.f32.mrb[0].mxu0
  %v455 = vadd.f32 0.0, %v454
  %v456 = vpop.f32.mrb[0].mxu0
  %457 = vmatprep.mubr.f32.mxu0 0.0
  %458 = vmatmul.mubr.f32.gmra.mrb[0].mxu0 %v297
  %v459 = vpop.f32.mrb[0].mxu0
  %v460 = vadd.f32 0.0, %v459
  %v461 = vpop.f32.mrb[0].mxu0
  %462 = vdwg.mxu0
  %v463 = vld [vmem:[%s3] sm:$0xff]
  %v464 = vld [vmem:[%s3 + $0x8] sm:$0xff]
  %v465 = vld [vmem:[%s3 + $0x10] sm:$0xff]
  %v466 = vld [vmem:[%s3 + $0x18] sm:$0xff]
  %v467 = vld [vmem:[%s3 + $0x20] sm:$0xff]
  %v468 = vld [vmem:[%s3 + $0x28] sm:$0xff]
  %v469 = vld [vmem:[%s3 + $0x30] sm:$0xff]
  %v470 = vld [vmem:[%s3 + $0x38] sm:$0xff]
  %v471 = vld [vmem:[%s3 + $0x40] sm:$0xff]
  %v472 = vld [vmem:[%s3 + $0x48] sm:$0xff]
  %v473 = vld [vmem:[%s3 + $0x50] sm:$0xff]
  %v474 = vld [vmem:[%s3 + $0x58] sm:$0xff]
  %v475 = vld [vmem:[%s3 + $0x60] sm:$0xff]
  %v476 = vld [vmem:[%s3 + $0x68] sm:$0xff]
  %v477 = vld [vmem:[%s3 + $0x70] sm:$0xff]
  %v478 = vld [vmem:[%s3 + $0x78] sm:$0xff]
  %v479 = vld [vmem:[%s3 + $0x80] sm:$0xff]
  %v480 = vld [vmem:[%s3 + $0x88] sm:$0xff]
  %v481 = vld [vmem:[%s3 + $0x90] sm:$0xff]
  %v482 = vld [vmem:[%s3 + $0x98] sm:$0xff]
  %v483 = vld [vmem:[%s3 + $0xa0] sm:$0xff]
  %v484 = vld [vmem:[%s3 + $0xa8] sm:$0xff]
  %v485 = vld [vmem:[%s3 + $0xb0] sm:$0xff]
  %v486 = vld [vmem:[%s3 + $0xb8] sm:$0xff]
  %v487 = vld [vmem:[%s3 + $0xc0] sm:$0xff]
  %v488 = vld [vmem:[%s3 + $0xc8] sm:$0xff]
  %v489 = vld [vmem:[%s3 + $0xd0] sm:$0xff]
  %v490 = vld [vmem:[%s3 + $0xd8] sm:$0xff]
  %v491 = vld [vmem:[%s3 + $0xe0] sm:$0xff]
  %v492 = vld [vmem:[%s3 + $0xe8] sm:$0xff]
  %v493 = vld [vmem:[%s3 + $0xf0] sm:$0xff]
  %v494 = vld [vmem:[%s3 + $0xf8] sm:$0xff]
  %v495 = vld [vmem:[%s3 + $0x100] sm:$0xff]
  %v496 = vld [vmem:[%s3 + $0x108] sm:$0xff]
  %v497 = vld [vmem:[%s3 + $0x110] sm:$0xff]
  %v498 = vld [vmem:[%s3 + $0x118] sm:$0xff]
  %v499 = vld [vmem:[%s3 + $0x120] sm:$0xff]
  %v500 = vld [vmem:[%s3 + $0x128] sm:$0xff]
  %v501 = vld [vmem:[%s3 + $0x130] sm:$0xff]
  %v502 = vld [vmem:[%s3 + $0x138] sm:$0xff]
  %v503 = vmul.f32 %v365, %v463
  %v504 = vmul.f32 %v370, %v464
  %v505 = vmul.f32 %v375, %v465
  %v506 = vmul.f32 %v380, %v466
  %v507 = vmul.f32 %v385, %v467
  %v508 = vmul.f32 %v390, %v468
  %v509 = vmul.f32 %v395, %v469
  %v510 = vmul.f32 %v400, %v470
  %v511 = vmul.f32 %v405, %v471
  %v512 = vmul.f32 %v410, %v472
  %v513 = vmul.f32 %v415, %v473
  %v514 = vmul.f32 %v420, %v474
  %v515 = vmul.f32 %v425, %v475
  %v516 = vmul.f32 %v430, %v476
  %v517 = vmul.f32 %v435, %v477
  %v518 = vmul.f32 %v440, %v478
  %v519 = vmul.f32 %v445, %v479
  %v520 = vmul.f32 %v450, %v480
  %v521 = vmul.f32 %v455, %v481
  %v522 = vmul.f32 %v460, %v482
  %v523 = vmul.f32 %v415, %v483
  %v524 = vmul.f32 %v420, %v484
  %v525 = vmul.f32 %v425, %v485
  %v526 = vmul.f32 %v430, %v486
  %v527 = vmul.f32 %v435, %v487
  %v528 = vmul.f32 %v440, %v488
  %v529 = vmul.f32 %v445, %v489
  %v530 = vmul.f32 %v450, %v490
  %v531 = vmul.f32 %v455, %v491
  %v532 = vmul.f32 %v460, %v492
  %v533 = vmul.f32 %v365, %v493
  %v534 = vmul.f32 %v370, %v494
  %v535 = vmul.f32 %v375, %v495
  %v536 = vmul.f32 %v380, %v496
  %v537 = vmul.f32 %v385, %v497
  %v538 = vmul.f32 %v390, %v498
  %v539 = vmul.f32 %v395, %v499
  %v540 = vmul.f32 %v400, %v500
  %v541 = vmul.f32 %v405, %v501
  %v542 = vmul.f32 %v410, %v502
  %v543 = vadd.f32 %v503, %v523
  %v544 = vadd.f32 %v504, %v524
  %v545 = vadd.f32 %v505, %v525
  %v546 = vadd.f32 %v506, %v526
  %v547 = vadd.f32 %v507, %v527
  %v548 = vadd.f32 %v508, %v528
  %v549 = vadd.f32 %v509, %v529
  %v550 = vadd.f32 %v510, %v530
  %v551 = vadd.f32 %v511, %v531
  %v552 = vadd.f32 %v512, %v532
  %v553 = vadd.f32 %v513, %v533
  %v554 = vadd.f32 %v514, %v534
  %v555 = vadd.f32 %v515, %v535
  %v556 = vadd.f32 %v516, %v536
  %v557 = vadd.f32 %v517, %v537
  %v558 = vadd.f32 %v518, %v538
  %v559 = vadd.f32 %v519, %v539
  %v560 = vadd.f32 %v520, %v540
  %v561 = vadd.f32 %v521, %v541
  %v562 = vadd.f32 %v522, %v542
  %v563 = vld [vmem:[%s3 + $0x140] sm:$0xff]
  %v564 = vld [vmem:[%s3 + $0x148] sm:$0xff]
  %v565 = vld [vmem:[%s3 + $0x150] sm:$0xff]
  %v566 = vld [vmem:[%s3 + $0x158] sm:$0xff]
  %v567 = vld [vmem:[%s3 + $0x160] sm:$0xff]
  %v568 = vld [vmem:[%s3 + $0x168] sm:$0xff]
  %v569 = vld [vmem:[%s3 + $0x170] sm:$0xff]
  %v570 = vld [vmem:[%s3 + $0x178] sm:$0xff]
  %v571 = vld [vmem:[%s3 + $0x180] sm:$0xff]
  %v572 = vld [vmem:[%s3 + $0x188] sm:$0xff]
  %v573 = vld [vmem:[%s3 + $0x190] sm:$0xff]
  %v574 = vld [vmem:[%s3 + $0x198] sm:$0xff]
  %v575 = vld [vmem:[%s3 + $0x1a0] sm:$0xff]
  %v576 = vld [vmem:[%s3 + $0x1a8] sm:$0xff]
  %v577 = vld [vmem:[%s3 + $0x1b0] sm:$0xff]
  %v578 = vld [vmem:[%s3 + $0x1b8] sm:$0xff]
  %v579 = vld [vmem:[%s2] sm:$0xff]
  %v580 = vld [vmem:[%s2 + $0x8] sm:$0xff]
  %v581 = vld [vmem:[%s2 + $0x10] sm:$0xff]
  %v582 = vld [vmem:[%s2 + $0x18] sm:$0xff]
  %v583 = vld [vmem:[%s2 + $0x20] sm:$0xff]
  %v584 = vld [vmem:[%s2 + $0x28] sm:$0xff]
  %v585 = vld [vmem:[%s2 + $0x30] sm:$0xff]
  %v586 = vld [vmem:[%s2 + $0x38] sm:$0xff]
  %v587 = vld [vmem:[%s2 + $0x40] sm:$0xff]
  %v588 = vld [vmem:[%s2 + $0x48] sm:$0xff]
  %v589 = vld [vmem:[%s2 + $0x50] sm:$0xff]
  %v590 = vld [vmem:[%s2 + $0x58] sm:$0xff]
  %v591 = vld [vmem:[%s2 + $0x60] sm:$0xff]
  %v592 = vld [vmem:[%s2 + $0x68] sm:$0xff]
  %v593 = vld [vmem:[%s2 + $0x70] sm:$0xff]
  %v594 = vld [vmem:[%s2 + $0x78] sm:$0xff]
  %v595 = vld [vmem:[%s2 + $0x80] sm:$0xff]
  %v596 = vld [vmem:[%s2 + $0x88] sm:$0xff]
  %v597 = vld [vmem:[%s2 + $0x90] sm:$0xff]
  %v598 = vld [vmem:[%s2 + $0x98] sm:$0xff]
  %v599 = vld [vmem:[%s2 + $0xa0] sm:$0xff]
  %v600 = vld [vmem:[%s2 + $0xa8] sm:$0xff]
  %v601 = vld [vmem:[%s2 + $0xb0] sm:$0xff]
  %v602 = vld [vmem:[%s2 + $0xb8] sm:$0xff]
  %v603 = vld [vmem:[%s2 + $0xc0] sm:$0xff]
  %v604 = vld [vmem:[%s2 + $0xc8] sm:$0xff]
  %v605 = vld [vmem:[%s2 + $0xd0] sm:$0xff]
  %v606 = vld [vmem:[%s2 + $0xd8] sm:$0xff]
  %v607 = vld [vmem:[%s2 + $0xe0] sm:$0xff]
  %v608 = vld [vmem:[%s2 + $0xe8] sm:$0xff]
  %v609 = vld [vmem:[%s2 + $0xf0] sm:$0xff]
  %v610 = vld [vmem:[%s2 + $0xf8] sm:$0xff]
  %v612 = vsel %vm36, %v580, 0
  %v615 = vsel %vm36, %v582, 0
  %v618 = vsel %vm36, %v584, 0
  %v621 = vsel %vm36, %v586, 0
  %v624 = vsel %vm36, %v588, 0
  %v627 = vsel %vm36, %v590, 0
  %v630 = vsel %vm36, %v592, 0
  %v633 = vsel %vm36, %v594, 0
  %v636 = vsel %vm36, %v596, 0
  %v639 = vsel %vm36, %v598, 0
  %v642 = vsel %vm36, %v600, 0
  %v645 = vsel %vm36, %v602, 0
  %v648 = vsel %vm36, %v604, 0
  %v651 = vsel %vm36, %v606, 0
  %v654 = vsel %vm36, %v608, 0
  %v657 = vsel %vm36, %v610, 0
  %659 = vmatprep.subr.mxu0 0.0
  %660 = vmatpush1.msra.mxu0 %v543
  %661 = vmatprep.subr.mxu0 0.0
  %662 = vmatpush1.msra.mxu0 %v544
  %663 = vmatprep.subr.mxu0 0.0
  %664 = vmatpush1.msra.mxu0 %v545
  %665 = vmatprep.subr.mxu0 0.0
  %666 = vmatpush1.msra.mxu0 %v546
  %667 = vmatprep.subr.mxu0 0.0
  %668 = vmatpush1.msra.mxu0 %v547
  %669 = vmatprep.subr.mxu0 0.0
  %670 = vmatpush1.msra.mxu0 %v548
  %671 = vmatprep.subr.mxu0 0.0
  %672 = vmatpush1.msra.mxu0 %v549
  %673 = vmatprep.subr.mxu0 0.0
  %674 = vmatpush1.msra.mxu0 %v550
  %675 = vmatprep.subr.mxu0 0.0
  %676 = vmatpush1.msra.mxu0 %v551
  %677 = vmatprep.subr.mxu0 0.0
  %678 = vmatpush1.msra.mxu0 %v552
  %679 = vmatprep.subr.mxu0 0.0
  %680 = vmatpush1.msra.mxu0 %v553
  %681 = vmatprep.subr.mxu0 0.0
  %682 = vmatpush1.msra.mxu0 %v554
  %683 = vmatprep.subr.mxu0 0.0
  %684 = vmatpush1.msra.mxu0 %v555
  %685 = vmatprep.subr.mxu0 0.0
  %686 = vmatpush1.msra.mxu0 %v556
  %687 = vmatprep.subr.mxu0 0.0
  %688 = vmatpush1.msra.mxu0 %v557
  %689 = vmatprep.subr.mxu0 0.0
  %690 = vmatpush1.msra.mxu0 %v558
  %691 = vmatprep.subr.mxu0 0.0
  %692 = vmatpush1.msra.mxu0 %v559
  %693 = vmatprep.subr.mxu0 0.0
  %694 = vmatpush1.msra.mxu0 %v560
  %695 = vmatprep.subr.mxu0 0.0
  %696 = vmatpush1.msra.mxu0 %v561
  %697 = vmatprep.subr.mxu0 0.0
  %698 = vmatpush1.msra.mxu0 %v562
  %699 = vmatprep.subr.mxu0 0.0
  %700 = vmatpush1.msra.mxu0 0.0
  %701 = vmatprep.subr.mxu0 0.0
  %702 = vmatpush1.msra.mxu0 0.0
  %703 = vmatprep.subr.mxu0 0.0
  %704 = vmatpush1.msra.mxu0 0.0
  %705 = vmatprep.subr.mxu0 0.0
  %706 = vmatpush1.msra.mxu0 0.0
  %707 = vmatprep.subr.mxu0 0.0
  %708 = vmatpush1.msra.mxu0 0.0
  %709 = vmatprep.subr.mxu0 0.0
  %710 = vmatpush1.msra.mxu0 0.0
  %711 = vmatprep.subr.mxu0 0.0
  %712 = vmatpush1.msra.mxu0 0.0
  %713 = vmatprep.subr.mxu0 0.0
  %714 = vmatpush1.msra.mxu0 0.0
  %715 = vmatprep.subr.mxu0 0.0
  %716 = vmatpush1.msra.mxu0 0.0
  %717 = vmatprep.subr.mxu0 0.0
  %718 = vmatpush1.msra.mxu0 0.0
  %719 = vmatprep.subr.mxu0 0.0
  %720 = vmatpush1.msra.mxu0 0.0
  %721 = vmatprep.subr.mxu0 0.0
  %722 = vmatpush1.msra.mxu0 0.0
  %723 = vmatprep.mubr.f32.mxu0 %v612
  %724 = vmatmul.mubr.f32.gmra.mrb[0].mxu0 %v579
  %v725 = vpop.f32.mrb[0].mxu0
  %v726 = vadd.f32 0.0, %v725
  %v727 = vpop.f32.mrb[0].mxu0
  %728 = vmatprep.mubr.f32.mxu0 %v615
  %729 = vmatmul.mubr.f32.gmra.mrb[0].mxu0 %v581
  %v730 = vpop.f32.mrb[0].mxu0
  %v731 = vadd.f32 0.0, %v730
  %v732 = vpop.f32.mrb[0].mxu0
  %733 = vmatprep.mubr.f32.mxu0 %v618
  %734 = vmatmul.mubr.f32.gmra.mrb[0].mxu0 %v583
  %v735 = vpop.f32.mrb[0].mxu0
  %v736 = vadd.f32 0.0, %v735
  %v737 = vpop.f32.mrb[0].mxu0
  %738 = vmatprep.mubr.f32.mxu0 %v621
  %739 = vmatmul.mubr.f32.gmra.mrb[0].mxu0 %v585
  %v740 = vpop.f32.mrb[0].mxu0
  %v741 = vadd.f32 0.0, %v740
  %v742 = vpop.f32.mrb[0].mxu0
  %743 = vmatprep.mubr.f32.mxu0 %v624
  %744 = vmatmul.mubr.f32.gmra.mrb[0].mxu0 %v587
  %v745 = vpop.f32.mrb[0].mxu0
  %v746 = vadd.f32 0.0, %v745
  %v747 = vpop.f32.mrb[0].mxu0
  %748 = vmatprep.mubr.f32.mxu0 %v627
  %749 = vmatmul.mubr.f32.gmra.mrb[0].mxu0 %v589
  %v750 = vpop.f32.mrb[0].mxu0
  %v751 = vadd.f32 0.0, %v750
  %v752 = vpop.f32.mrb[0].mxu0
  %753 = vmatprep.mubr.f32.mxu0 %v630
  %754 = vmatmul.mubr.f32.gmra.mrb[0].mxu0 %v591
  %v755 = vpop.f32.mrb[0].mxu0
  %v756 = vadd.f32 0.0, %v755
  %v757 = vpop.f32.mrb[0].mxu0
  %758 = vmatprep.mubr.f32.mxu0 %v633
  %759 = vmatmul.mubr.f32.gmra.mrb[0].mxu0 %v593
  %v760 = vpop.f32.mrb[0].mxu0
  %v761 = vadd.f32 0.0, %v760
  %v762 = vpop.f32.mrb[0].mxu0
  %763 = vmatprep.mubr.f32.mxu0 %v636
  %764 = vmatmul.mubr.f32.gmra.mrb[0].mxu0 %v595
  %v765 = vpop.f32.mrb[0].mxu0
  %v766 = vadd.f32 0.0, %v765
  %v767 = vpop.f32.mrb[0].mxu0
  %768 = vmatprep.mubr.f32.mxu0 %v639
  %769 = vmatmul.mubr.f32.gmra.mrb[0].mxu0 %v597
  %v770 = vpop.f32.mrb[0].mxu0
  %v771 = vadd.f32 0.0, %v770
  %v772 = vpop.f32.mrb[0].mxu0
  %773 = vmatprep.mubr.f32.mxu0 %v642
  %774 = vmatmul.mubr.f32.gmra.mrb[0].mxu0 %v599
  %v775 = vpop.f32.mrb[0].mxu0
  %v776 = vadd.f32 0.0, %v775
  %v777 = vpop.f32.mrb[0].mxu0
  %778 = vmatprep.mubr.f32.mxu0 %v645
  %779 = vmatmul.mubr.f32.gmra.mrb[0].mxu0 %v601
  %v780 = vpop.f32.mrb[0].mxu0
  %v781 = vadd.f32 0.0, %v780
  %v782 = vpop.f32.mrb[0].mxu0
  %783 = vmatprep.mubr.f32.mxu0 %v648
  %784 = vmatmul.mubr.f32.gmra.mrb[0].mxu0 %v603
  %v785 = vpop.f32.mrb[0].mxu0
  %v786 = vadd.f32 0.0, %v785
  %v787 = vpop.f32.mrb[0].mxu0
  %788 = vmatprep.mubr.f32.mxu0 %v651
  %789 = vmatmul.mubr.f32.gmra.mrb[0].mxu0 %v605
  %v790 = vpop.f32.mrb[0].mxu0
  %v791 = vadd.f32 0.0, %v790
  %v792 = vpop.f32.mrb[0].mxu0
  %793 = vmatprep.mubr.f32.mxu0 %v654
  %794 = vmatmul.mubr.f32.gmra.mrb[0].mxu0 %v607
  %v795 = vpop.f32.mrb[0].mxu0
  %v796 = vadd.f32 0.0, %v795
  %v797 = vpop.f32.mrb[0].mxu0
  %798 = vmatprep.mubr.f32.mxu0 %v657
  %799 = vmatmul.mubr.f32.gmra.mrb[0].mxu0 %v609
  %v800 = vpop.f32.mrb[0].mxu0
  %v801 = vadd.f32 0.0, %v800
  %v802 = vpop.f32.mrb[0].mxu0
  %803 = vdwg.mxu0
  %v804 = vadd.f32 %v20, %v726
  %v805 = vadd.f32 %v21, %v731
  %v806 = vadd.f32 %v22, %v736
  %v807 = vadd.f32 %v23, %v741
  %v808 = vadd.f32 %v24, %v746
  %v809 = vadd.f32 %v25, %v751
  %v810 = vadd.f32 %v26, %v756
  %v811 = vadd.f32 %v27, %v761
  %v812 = vadd.f32 %v28, %v766
  %v813 = vadd.f32 %v29, %v771
  %v814 = vadd.f32 %v30, %v776
  %v815 = vadd.f32 %v31, %v781
  %v816 = vadd.f32 %v32, %v786
  %v817 = vadd.f32 %v33, %v791
  %v818 = vadd.f32 %v34, %v796
  %v819 = vadd.f32 %v35, %v801
  %v820 = vadd.f32 %v804, %v563
  %v821 = vadd.f32 %v805, %v564
  %v822 = vadd.f32 %v806, %v565
  %v823 = vadd.f32 %v807, %v566
  %v824 = vadd.f32 %v808, %v567
  %v825 = vadd.f32 %v809, %v568
  %v826 = vadd.f32 %v810, %v569
  %v827 = vadd.f32 %v811, %v570
  %v828 = vadd.f32 %v812, %v571
  %v829 = vadd.f32 %v813, %v572
  %v830 = vadd.f32 %v814, %v573
  %v831 = vadd.f32 %v815, %v574
  %v832 = vadd.f32 %v816, %v575
  %v833 = vadd.f32 %v817, %v576
  %v834 = vadd.f32 %v818, %v577
  %v835 = vadd.f32 %v819, %v578
  %v836 = vsel %vm36, %v820, 0.0
  %837 = vadd.xlane.f32.xlu0 %v836
  %v838 = vpop.xlane.xlu0 %837
  %v839 = vsel %vm36, %v821, 0.0
  %840 = vadd.xlane.f32.xlu0 %v839
  %v841 = vpop.xlane.xlu0 %840
  %v842 = vsel %vm36, %v822, 0.0
  %843 = vadd.xlane.f32.xlu0 %v842
  %v844 = vpop.xlane.xlu0 %843
  %v845 = vsel %vm36, %v823, 0.0
  %846 = vadd.xlane.f32.xlu0 %v845
  %v847 = vpop.xlane.xlu0 %846
  %v848 = vsel %vm36, %v824, 0.0
  %849 = vadd.xlane.f32.xlu0 %v848
  %v850 = vpop.xlane.xlu0 %849
  %v851 = vsel %vm36, %v825, 0.0
  %852 = vadd.xlane.f32.xlu0 %v851
  %v853 = vpop.xlane.xlu0 %852
  %v854 = vsel %vm36, %v826, 0.0
  %855 = vadd.xlane.f32.xlu0 %v854
  %v856 = vpop.xlane.xlu0 %855
  %v857 = vsel %vm36, %v827, 0.0
  %858 = vadd.xlane.f32.xlu0 %v857
  %v859 = vpop.xlane.xlu0 %858
  %v860 = vsel %vm36, %v828, 0.0
  %861 = vadd.xlane.f32.xlu0 %v860
  %v862 = vpop.xlane.xlu0 %861
  %v863 = vsel %vm36, %v829, 0.0
  %864 = vadd.xlane.f32.xlu0 %v863
  %v865 = vpop.xlane.xlu0 %864
  %v866 = vsel %vm36, %v830, 0.0
  %867 = vadd.xlane.f32.xlu0 %v866
  %v868 = vpop.xlane.xlu0 %867
  %v869 = vsel %vm36, %v831, 0.0
  %870 = vadd.xlane.f32.xlu0 %v869
  %v871 = vpop.xlane.xlu0 %870
  %v872 = vsel %vm36, %v832, 0.0
  %873 = vadd.xlane.f32.xlu0 %v872
  %v874 = vpop.xlane.xlu0 %873
  %v875 = vsel %vm36, %v833, 0.0
  %876 = vadd.xlane.f32.xlu0 %v875
  %v877 = vpop.xlane.xlu0 %876
  %v878 = vsel %vm36, %v834, 0.0
  %879 = vadd.xlane.f32.xlu0 %v878
  %v880 = vpop.xlane.xlu0 %879
  %v881 = vsel %vm36, %v835, 0.0
  %882 = vadd.xlane.f32.xlu0 %v881
  %v883 = vpop.xlane.xlu0 %882
  %v884 = vmul.f32 %v838, %v85
  %v885 = vmul.f32 %v841, %v85
  %v886 = vmul.f32 %v844, %v85
  %v887 = vmul.f32 %v847, %v85
  %v888 = vmul.f32 %v850, %v85
  %v889 = vmul.f32 %v853, %v85
  %v890 = vmul.f32 %v856, %v85
  %v891 = vmul.f32 %v859, %v85
  %v892 = vmul.f32 %v862, %v85
  %v893 = vmul.f32 %v865, %v85
  %v894 = vmul.f32 %v868, %v85
  %v895 = vmul.f32 %v871, %v85
  %v896 = vmul.f32 %v874, %v85
  %v897 = vmul.f32 %v877, %v85
  %v898 = vmul.f32 %v880, %v85
  %v899 = vmul.f32 %v883, %v85
  %v900 = vmul.f32 %v820, %v820
  %v901 = vmul.f32 %v821, %v821
  %v902 = vmul.f32 %v822, %v822
  %v903 = vmul.f32 %v823, %v823
  %v904 = vmul.f32 %v824, %v824
  %v905 = vmul.f32 %v825, %v825
  %v906 = vmul.f32 %v826, %v826
  %v907 = vmul.f32 %v827, %v827
  %v908 = vmul.f32 %v828, %v828
  %v909 = vmul.f32 %v829, %v829
  %v910 = vmul.f32 %v830, %v830
  %v911 = vmul.f32 %v831, %v831
  %v912 = vmul.f32 %v832, %v832
  %v913 = vmul.f32 %v833, %v833
  %v914 = vmul.f32 %v834, %v834
  %v915 = vmul.f32 %v835, %v835
  %v916 = vsel %vm36, %v900, 0.0
  %917 = vadd.xlane.f32.xlu0 %v916
  %v918 = vpop.xlane.xlu0 %917
  %v919 = vsel %vm36, %v901, 0.0
  %920 = vadd.xlane.f32.xlu0 %v919
  %v921 = vpop.xlane.xlu0 %920
  %v922 = vsel %vm36, %v902, 0.0
  %923 = vadd.xlane.f32.xlu0 %v922
  %v924 = vpop.xlane.xlu0 %923
  %v925 = vsel %vm36, %v903, 0.0
  %926 = vadd.xlane.f32.xlu0 %v925
  %v927 = vpop.xlane.xlu0 %926
  %v928 = vsel %vm36, %v904, 0.0
  %929 = vadd.xlane.f32.xlu0 %v928
  %v930 = vpop.xlane.xlu0 %929
  %v931 = vsel %vm36, %v905, 0.0
  %932 = vadd.xlane.f32.xlu0 %v931
  %v933 = vpop.xlane.xlu0 %932
  %v934 = vsel %vm36, %v906, 0.0
  %935 = vadd.xlane.f32.xlu0 %v934
  %v936 = vpop.xlane.xlu0 %935
  %v937 = vsel %vm36, %v907, 0.0
  %938 = vadd.xlane.f32.xlu0 %v937
  %v939 = vpop.xlane.xlu0 %938
  %v940 = vsel %vm36, %v908, 0.0
  %941 = vadd.xlane.f32.xlu0 %v940
  %v942 = vpop.xlane.xlu0 %941
  %v943 = vsel %vm36, %v909, 0.0
  %944 = vadd.xlane.f32.xlu0 %v943
  %v945 = vpop.xlane.xlu0 %944
  %v946 = vsel %vm36, %v910, 0.0
  %947 = vadd.xlane.f32.xlu0 %v946
  %v948 = vpop.xlane.xlu0 %947
  %v949 = vsel %vm36, %v911, 0.0
  %950 = vadd.xlane.f32.xlu0 %v949
  %v951 = vpop.xlane.xlu0 %950
  %v952 = vsel %vm36, %v912, 0.0
  %953 = vadd.xlane.f32.xlu0 %v952
  %v954 = vpop.xlane.xlu0 %953
  %v955 = vsel %vm36, %v913, 0.0
  %956 = vadd.xlane.f32.xlu0 %v955
  %v957 = vpop.xlane.xlu0 %956
  %v958 = vsel %vm36, %v914, 0.0
  %959 = vadd.xlane.f32.xlu0 %v958
  %v960 = vpop.xlane.xlu0 %959
  %v961 = vsel %vm36, %v915, 0.0
  %962 = vadd.xlane.f32.xlu0 %v961
  %v963 = vpop.xlane.xlu0 %962
  %v964 = vmul.f32 %v918, %v85
  %v965 = vmul.f32 %v921, %v85
  %v966 = vmul.f32 %v924, %v85
  %v967 = vmul.f32 %v927, %v85
  %v968 = vmul.f32 %v930, %v85
  %v969 = vmul.f32 %v933, %v85
  %v970 = vmul.f32 %v936, %v85
  %v971 = vmul.f32 %v939, %v85
  %v972 = vmul.f32 %v942, %v85
  %v973 = vmul.f32 %v945, %v85
  %v974 = vmul.f32 %v948, %v85
  %v975 = vmul.f32 %v951, %v85
  %v976 = vmul.f32 %v954, %v85
  %v977 = vmul.f32 %v957, %v85
  %v978 = vmul.f32 %v960, %v85
  %v979 = vmul.f32 %v963, %v85
  %v980 = vsub.f32 %v820, %v884
  %v981 = vsub.f32 %v821, %v885
  %v982 = vsub.f32 %v822, %v886
  %v983 = vsub.f32 %v823, %v887
  %v984 = vsub.f32 %v824, %v888
  %v985 = vsub.f32 %v825, %v889
  %v986 = vsub.f32 %v826, %v890
  %v987 = vsub.f32 %v827, %v891
  %v988 = vsub.f32 %v828, %v892
  %v989 = vsub.f32 %v829, %v893
  %v990 = vsub.f32 %v830, %v894
  %v991 = vsub.f32 %v831, %v895
  %v992 = vsub.f32 %v832, %v896
  %v993 = vsub.f32 %v833, %v897
  %v994 = vsub.f32 %v834, %v898
  %v995 = vsub.f32 %v835, %v899
  %v996 = vmul.f32 %v884, %v884
  %v997 = vmul.f32 %v885, %v885
  %v998 = vmul.f32 %v886, %v886
  %v999 = vmul.f32 %v887, %v887
  %v1000 = vmul.f32 %v888, %v888
  %v1001 = vmul.f32 %v889, %v889
  %v1002 = vmul.f32 %v890, %v890
  %v1003 = vmul.f32 %v891, %v891
  %v1004 = vmul.f32 %v892, %v892
  %v1005 = vmul.f32 %v893, %v893
  %v1006 = vmul.f32 %v894, %v894
  %v1007 = vmul.f32 %v895, %v895
  %v1008 = vmul.f32 %v896, %v896
  %v1009 = vmul.f32 %v897, %v897
  %v1010 = vmul.f32 %v898, %v898
  %v1011 = vmul.f32 %v899, %v899
  %v1012 = vsub.f32 %v964, %v996
  %v1013 = vsub.f32 %v965, %v997
  %v1014 = vsub.f32 %v966, %v998
  %v1015 = vsub.f32 %v967, %v999
  %v1016 = vsub.f32 %v968, %v1000
  %v1017 = vsub.f32 %v969, %v1001
  %v1018 = vsub.f32 %v970, %v1002
  %v1019 = vsub.f32 %v971, %v1003
  %v1020 = vsub.f32 %v972, %v1004
  %v1021 = vsub.f32 %v973, %v1005
  %v1022 = vsub.f32 %v974, %v1006
  %v1023 = vsub.f32 %v975, %v1007
  %v1024 = vsub.f32 %v976, %v1008
  %v1025 = vsub.f32 %v977, %v1009
  %v1026 = vsub.f32 %v978, %v1010
  %v1027 = vsub.f32 %v979, %v1011
  %v1028 = vadd.f32 %v1012, 1e-05
  %v1029 = vadd.f32 %v1013, 1e-05
  %v1030 = vadd.f32 %v1014, 1e-05
  %v1031 = vadd.f32 %v1015, 1e-05
  %v1032 = vadd.f32 %v1016, 1e-05
  %v1033 = vadd.f32 %v1017, 1e-05
  %v1034 = vadd.f32 %v1018, 1e-05
  %v1035 = vadd.f32 %v1019, 1e-05
  %v1036 = vadd.f32 %v1020, 1e-05
  %v1037 = vadd.f32 %v1021, 1e-05
  %v1038 = vadd.f32 %v1022, 1e-05
  %v1039 = vadd.f32 %v1023, 1e-05
  %v1040 = vadd.f32 %v1024, 1e-05
  %v1041 = vadd.f32 %v1025, 1e-05
  %v1042 = vadd.f32 %v1026, 1e-05
  %v1043 = vadd.f32 %v1027, 1e-05
  %v1044 = vrsqrt.pop %v1028
  %v1045 = vrsqrt.pop %v1029
  %v1046 = vrsqrt.pop %v1030
  %v1047 = vrsqrt.pop %v1031
  %v1048 = vrsqrt.pop %v1032
  %v1049 = vrsqrt.pop %v1033
  %v1050 = vrsqrt.pop %v1034
  %v1051 = vrsqrt.pop %v1035
  %v1052 = vrsqrt.pop %v1036
  %v1053 = vrsqrt.pop %v1037
  %v1054 = vrsqrt.pop %v1038
  %v1055 = vrsqrt.pop %v1039
  %v1056 = vrsqrt.pop %v1040
  %v1057 = vrsqrt.pop %v1041
  %v1058 = vrsqrt.pop %v1042
  %v1059 = vrsqrt.pop %v1043
  %v1060 = vmul.f32 %v980, %v1044
  %v1061 = vmul.f32 %v981, %v1045
  %v1062 = vmul.f32 %v982, %v1046
  %v1063 = vmul.f32 %v983, %v1047
  %v1064 = vmul.f32 %v984, %v1048
  %v1065 = vmul.f32 %v985, %v1049
  %v1066 = vmul.f32 %v986, %v1050
  %v1067 = vmul.f32 %v987, %v1051
  %v1068 = vmul.f32 %v988, %v1052
  %v1069 = vmul.f32 %v989, %v1053
  %v1070 = vmul.f32 %v990, %v1054
  %v1071 = vmul.f32 %v991, %v1055
  %v1072 = vmul.f32 %v992, %v1056
  %v1073 = vmul.f32 %v993, %v1057
  %v1074 = vmul.f32 %v994, %v1058
  %v1075 = vmul.f32 %v995, %v1059
  %v1076 = vld [vmem:[%s4] sm:$0xff]
  %v1077 = vld [vmem:[%s4 + $0x8] sm:$0xff]
  %v1078 = vld [vmem:[%s4 + $0x10] sm:$0xff]
  %v1079 = vld [vmem:[%s4 + $0x18] sm:$0xff]
  %v1080 = vld [vmem:[%s4 + $0x20] sm:$0x1]
  %v1081 = vlaneseq
  %v1082 = vshrl.u32 %v1081, 7
  %v1083 = vsub.s32 0, %v1082
  %v1084 = vrot.slane %v1080, %v1083
  %v1086 = vsel %vm36, %v1060, 0
  %v1089 = vsel %vm36, %v1061, 0
  %v1092 = vsel %vm36, %v1062, 0
  %v1095 = vsel %vm36, %v1063, 0
  %v1098 = vsel %vm36, %v1064, 0
  %v1101 = vsel %vm36, %v1065, 0
  %v1104 = vsel %vm36, %v1066, 0
  %v1107 = vsel %vm36, %v1067, 0
  %v1110 = vsel %vm36, %v1068, 0
  %v1113 = vsel %vm36, %v1069, 0
  %v1116 = vsel %vm36, %v1070, 0
  %v1119 = vsel %vm36, %v1071, 0
  %v1122 = vsel %vm36, %v1072, 0
  %v1125 = vsel %vm36, %v1073, 0
  %v1128 = vsel %vm36, %v1074, 0
  %v1131 = vsel %vm36, %v1075, 0
  %1133 = vmatprep.subr.mxu0 0.0
  %1134 = vmatpush1.msra.mxu0 %v1076
  %1135 = vmatprep.subr.mxu0 0.0
  %1136 = vmatpush1.msra.mxu0 %v1077
  %1137 = vmatprep.subr.mxu0 0.0
  %1138 = vmatpush1.msra.mxu0 %v1078
  %1139 = vmatprep.subr.mxu0 0.0
  %1140 = vmatpush1.msra.mxu0 %v1079
  %1141 = vmatprep.subr.mxu0 0.0
  %1142 = vmatpush1.msra.mxu0 0.0
  %1143 = vmatprep.subr.mxu0 0.0
  %1144 = vmatpush1.msra.mxu0 0.0
  %1145 = vmatprep.subr.mxu0 0.0
  %1146 = vmatpush1.msra.mxu0 0.0
  %1147 = vmatprep.subr.mxu0 0.0
  %1148 = vmatpush1.msra.mxu0 0.0
  %1149 = vmatprep.subr.mxu0 0.0
  %1150 = vmatpush1.msra.mxu0 0.0
  %1151 = vmatprep.subr.mxu0 0.0
  %1152 = vmatpush1.msra.mxu0 0.0
  %1153 = vmatprep.subr.mxu0 0.0
  %1154 = vmatpush1.msra.mxu0 0.0
  %1155 = vmatprep.subr.mxu0 0.0
  %1156 = vmatpush1.msra.mxu0 0.0
  %1157 = vmatprep.subr.mxu0 0.0
  %1158 = vmatpush1.msra.mxu0 0.0
  %1159 = vmatprep.subr.mxu0 0.0
  %1160 = vmatpush1.msra.mxu0 0.0
  %1161 = vmatprep.subr.mxu0 0.0
  %1162 = vmatpush1.msra.mxu0 0.0
  %1163 = vmatprep.subr.mxu0 0.0
  %1164 = vmatpush1.msra.mxu0 0.0
  %1165 = vmatprep.subr.mxu0 0.0
  %1166 = vmatpush1.msra.mxu0 0.0
  %1167 = vmatprep.subr.mxu0 0.0
  %1168 = vmatpush1.msra.mxu0 0.0
  %1169 = vmatprep.subr.mxu0 0.0
  %1170 = vmatpush1.msra.mxu0 0.0
  %1171 = vmatprep.subr.mxu0 0.0
  %1172 = vmatpush1.msra.mxu0 0.0
  %1173 = vmatprep.subr.mxu0 0.0
  %1174 = vmatpush1.msra.mxu0 0.0
  %1175 = vmatprep.subr.mxu0 0.0
  %1176 = vmatpush1.msra.mxu0 0.0
  %1177 = vmatprep.subr.mxu0 0.0
  %1178 = vmatpush1.msra.mxu0 0.0
  %1179 = vmatprep.subr.mxu0 0.0
  %1180 = vmatpush1.msra.mxu0 0.0
  %1181 = vmatprep.subr.mxu0 0.0
  %1182 = vmatpush1.msra.mxu0 0.0
  %1183 = vmatprep.subr.mxu0 0.0
  %1184 = vmatpush1.msra.mxu0 0.0
  %1185 = vmatprep.subr.mxu0 0.0
  %1186 = vmatpush1.msra.mxu0 0.0
  %1187 = vmatprep.subr.mxu0 0.0
  %1188 = vmatpush1.msra.mxu0 0.0
  %1189 = vmatprep.subr.mxu0 0.0
  %1190 = vmatpush1.msra.mxu0 0.0
  %1191 = vmatprep.subr.mxu0 0.0
  %1192 = vmatpush1.msra.mxu0 0.0
  %1193 = vmatprep.subr.mxu0 0.0
  %1194 = vmatpush1.msra.mxu0 0.0
  %1195 = vmatprep.subr.mxu0 0.0
  %1196 = vmatpush1.msra.mxu0 0.0
  %1197 = vmatprep.mubr.f32.mxu0 0.0
  %1198 = vmatmul.mubr.f32.gmra.mrb[0].mxu0 %v1086
  %v1199 = vpop.f32.mrb[0].mxu0
  %v1200 = vadd.f32 %v1084, %v1199
  %v1201 = vpop.f32.mrb[0].mxu0
  %1202 = vmatprep.mubr.f32.mxu0 0.0
  %1203 = vmatmul.mubr.f32.gmra.mrb[0].mxu0 %v1089
  %v1204 = vpop.f32.mrb[0].mxu0
  %v1205 = vadd.f32 %v1084, %v1204
  %v1206 = vpop.f32.mrb[0].mxu0
  %1207 = vmatprep.mubr.f32.mxu0 0.0
  %1208 = vmatmul.mubr.f32.gmra.mrb[0].mxu0 %v1092
  %v1209 = vpop.f32.mrb[0].mxu0
  %v1210 = vadd.f32 %v1084, %v1209
  %v1211 = vpop.f32.mrb[0].mxu0
  %1212 = vmatprep.mubr.f32.mxu0 0.0
  %1213 = vmatmul.mubr.f32.gmra.mrb[0].mxu0 %v1095
  %v1214 = vpop.f32.mrb[0].mxu0
  %v1215 = vadd.f32 %v1084, %v1214
  %v1216 = vpop.f32.mrb[0].mxu0
  %1217 = vmatprep.mubr.f32.mxu0 0.0
  %1218 = vmatmul.mubr.f32.gmra.mrb[0].mxu0 %v1098
  %v1219 = vpop.f32.mrb[0].mxu0
  %v1220 = vadd.f32 %v1084, %v1219
  %v1221 = vpop.f32.mrb[0].mxu0
  %1222 = vmatprep.mubr.f32.mxu0 0.0
  %1223 = vmatmul.mubr.f32.gmra.mrb[0].mxu0 %v1101
  %v1224 = vpop.f32.mrb[0].mxu0
  %v1225 = vadd.f32 %v1084, %v1224
  %v1226 = vpop.f32.mrb[0].mxu0
  %1227 = vmatprep.mubr.f32.mxu0 0.0
  %1228 = vmatmul.mubr.f32.gmra.mrb[0].mxu0 %v1104
  %v1229 = vpop.f32.mrb[0].mxu0
  %v1230 = vadd.f32 %v1084, %v1229
  %v1231 = vpop.f32.mrb[0].mxu0
  %1232 = vmatprep.mubr.f32.mxu0 0.0
  %1233 = vmatmul.mubr.f32.gmra.mrb[0].mxu0 %v1107
  %v1234 = vpop.f32.mrb[0].mxu0
  %v1235 = vadd.f32 %v1084, %v1234
  %v1236 = vpop.f32.mrb[0].mxu0
  %1237 = vmatprep.mubr.f32.mxu0 0.0
  %1238 = vmatmul.mubr.f32.gmra.mrb[0].mxu0 %v1110
  %v1239 = vpop.f32.mrb[0].mxu0
  %v1240 = vadd.f32 %v1084, %v1239
  %v1241 = vpop.f32.mrb[0].mxu0
  %1242 = vmatprep.mubr.f32.mxu0 0.0
  %1243 = vmatmul.mubr.f32.gmra.mrb[0].mxu0 %v1113
  %v1244 = vpop.f32.mrb[0].mxu0
  %v1245 = vadd.f32 %v1084, %v1244
  %v1246 = vpop.f32.mrb[0].mxu0
  %1247 = vmatprep.mubr.f32.mxu0 0.0
  %1248 = vmatmul.mubr.f32.gmra.mrb[0].mxu0 %v1116
  %v1249 = vpop.f32.mrb[0].mxu0
  %v1250 = vadd.f32 %v1084, %v1249
  %v1251 = vpop.f32.mrb[0].mxu0
  %1252 = vmatprep.mubr.f32.mxu0 0.0
  %1253 = vmatmul.mubr.f32.gmra.mrb[0].mxu0 %v1119
  %v1254 = vpop.f32.mrb[0].mxu0
  %v1255 = vadd.f32 %v1084, %v1254
  %v1256 = vpop.f32.mrb[0].mxu0
  %1257 = vmatprep.mubr.f32.mxu0 0.0
  %1258 = vmatmul.mubr.f32.gmra.mrb[0].mxu0 %v1122
  %v1259 = vpop.f32.mrb[0].mxu0
  %v1260 = vadd.f32 %v1084, %v1259
  %v1261 = vpop.f32.mrb[0].mxu0
  %1262 = vmatprep.mubr.f32.mxu0 0.0
  %1263 = vmatmul.mubr.f32.gmra.mrb[0].mxu0 %v1125
  %v1264 = vpop.f32.mrb[0].mxu0
  %v1265 = vadd.f32 %v1084, %v1264
  %v1266 = vpop.f32.mrb[0].mxu0
  %1267 = vmatprep.mubr.f32.mxu0 0.0
  %1268 = vmatmul.mubr.f32.gmra.mrb[0].mxu0 %v1128
  %v1269 = vpop.f32.mrb[0].mxu0
  %v1270 = vadd.f32 %v1084, %v1269
  %v1271 = vpop.f32.mrb[0].mxu0
  %1272 = vmatprep.mubr.f32.mxu0 0.0
  %1273 = vmatmul.mubr.f32.gmra.mrb[0].mxu0 %v1131
  %v1274 = vpop.f32.mrb[0].mxu0
  %v1275 = vadd.f32 %v1084, %v1274
  %v1276 = vpop.f32.mrb[0].mxu0
  %1277 = vdwg.mxu0
  %v1278 = vmul.f32 %v1200, 0.5
  %v1279 = vmul.f32 %v1205, 0.5
  %v1280 = vmul.f32 %v1210, 0.5
  %v1281 = vmul.f32 %v1215, 0.5
  %v1282 = vmul.f32 %v1220, 0.5
  %v1283 = vmul.f32 %v1225, 0.5
  %v1284 = vmul.f32 %v1230, 0.5
  %v1285 = vmul.f32 %v1235, 0.5
  %v1286 = vmul.f32 %v1240, 0.5
  %v1287 = vmul.f32 %v1245, 0.5
  %v1288 = vmul.f32 %v1250, 0.5
  %v1289 = vmul.f32 %v1255, 0.5
  %v1290 = vmul.f32 %v1260, 0.5
  %v1291 = vmul.f32 %v1265, 0.5
  %v1292 = vmul.f32 %v1270, 0.5
  %v1293 = vmul.f32 %v1275, 0.5
  %v1294 = vmul.f32 %v1200, 0.70710677
  %v1295 = vmul.f32 %v1205, 0.70710677
  %v1296 = vmul.f32 %v1210, 0.70710677
  %v1297 = vmul.f32 %v1215, 0.70710677
  %v1298 = vmul.f32 %v1220, 0.70710677
  %v1299 = vmul.f32 %v1225, 0.70710677
  %v1300 = vmul.f32 %v1230, 0.70710677
  %v1301 = vmul.f32 %v1235, 0.70710677
  %v1302 = vmul.f32 %v1240, 0.70710677
  %v1303 = vmul.f32 %v1245, 0.70710677
  %v1304 = vmul.f32 %v1250, 0.70710677
  %v1305 = vmul.f32 %v1255, 0.70710677
  %v1306 = vmul.f32 %v1260, 0.70710677
  %v1307 = vmul.f32 %v1265, 0.70710677
  %v1308 = vmul.f32 %v1270, 0.70710677
  %v1309 = vmul.f32 %v1275, 0.70710677
  %v1310 = verf.f32.pop %v1294
  %v1311 = verf.f32.pop %v1295
  %v1312 = verf.f32.pop %v1296
  %v1313 = verf.f32.pop %v1297
  %v1314 = verf.f32.pop %v1298
  %v1315 = verf.f32.pop %v1299
  %v1316 = verf.f32.pop %v1300
  %v1317 = verf.f32.pop %v1301
  %v1318 = verf.f32.pop %v1302
  %v1319 = verf.f32.pop %v1303
  %v1320 = verf.f32.pop %v1304
  %v1321 = verf.f32.pop %v1305
  %v1322 = verf.f32.pop %v1306
  %v1323 = verf.f32.pop %v1307
  %v1324 = verf.f32.pop %v1308
  %v1325 = verf.f32.pop %v1309
  %v1326 = vadd.f32 %v1310, 1.0
  %v1327 = vadd.f32 %v1311, 1.0
  %v1328 = vadd.f32 %v1312, 1.0
  %v1329 = vadd.f32 %v1313, 1.0
  %v1330 = vadd.f32 %v1314, 1.0
  %v1331 = vadd.f32 %v1315, 1.0
  %v1332 = vadd.f32 %v1316, 1.0
  %v1333 = vadd.f32 %v1317, 1.0
  %v1334 = vadd.f32 %v1318, 1.0
  %v1335 = vadd.f32 %v1319, 1.0
  %v1336 = vadd.f32 %v1320, 1.0
  %v1337 = vadd.f32 %v1321, 1.0
  %v1338 = vadd.f32 %v1322, 1.0
  %v1339 = vadd.f32 %v1323, 1.0
  %v1340 = vadd.f32 %v1324, 1.0
  %v1341 = vadd.f32 %v1325, 1.0
  %v1342 = vmul.f32 %v1278, %v1326
  %v1343 = vmul.f32 %v1279, %v1327
  %v1344 = vmul.f32 %v1280, %v1328
  %v1345 = vmul.f32 %v1281, %v1329
  %v1346 = vmul.f32 %v1282, %v1330
  %v1347 = vmul.f32 %v1283, %v1331
  %v1348 = vmul.f32 %v1284, %v1332
  %v1349 = vmul.f32 %v1285, %v1333
  %v1350 = vmul.f32 %v1286, %v1334
  %v1351 = vmul.f32 %v1287, %v1335
  %v1352 = vmul.f32 %v1288, %v1336
  %v1353 = vmul.f32 %v1289, %v1337
  %v1354 = vmul.f32 %v1290, %v1338
  %v1355 = vmul.f32 %v1291, %v1339
  %v1356 = vmul.f32 %v1292, %v1340
  %v1357 = vmul.f32 %v1293, %v1341
  %v1358 = vld [vmem:[%s3 + $0x1c0] sm:$0xff]
  %v1359 = vld [vmem:[%s3 + $0x1c8] sm:$0xff]
  %v1360 = vld [vmem:[%s3 + $0x1d0] sm:$0xff]
  %v1361 = vld [vmem:[%s3 + $0x1d8] sm:$0xff]
  %v1362 = vld [vmem:[%s3 + $0x1e0] sm:$0xff]
  %v1363 = vld [vmem:[%s3 + $0x1e8] sm:$0xff]
  %v1364 = vld [vmem:[%s3 + $0x1f0] sm:$0xff]
  %v1365 = vld [vmem:[%s3 + $0x1f8] sm:$0xff]
  %v1366 = vld [vmem:[%s3 + $0x200] sm:$0xff]
  %v1367 = vld [vmem:[%s3 + $0x208] sm:$0xff]
  %v1368 = vld [vmem:[%s3 + $0x210] sm:$0xff]
  %v1369 = vld [vmem:[%s3 + $0x218] sm:$0xff]
  %v1370 = vld [vmem:[%s3 + $0x220] sm:$0xff]
  %v1371 = vld [vmem:[%s3 + $0x228] sm:$0xff]
  %v1372 = vld [vmem:[%s3 + $0x230] sm:$0xff]
  %v1373 = vld [vmem:[%s3 + $0x238] sm:$0xff]
  %v1374 = vld [vmem:[%s3 + $0x240] sm:$0x1]
  %v1375 = vlaneseq
  %v1376 = vshrl.u32 %v1375, 7
  %v1377 = vsub.s32 0, %v1376
  %v1378 = vrot.slane %v1374, %v1377
  %1379 = vmatprep.subr.mxu0 0.0
  %1380 = vmatpush1.msra.mxu0 %v1358
  %1381 = vmatprep.subr.mxu0 0.0
  %1382 = vmatpush1.msra.mxu0 %v1359
  %1383 = vmatprep.subr.mxu0 0.0
  %1384 = vmatpush1.msra.mxu0 %v1360
  %1385 = vmatprep.subr.mxu0 0.0
  %1386 = vmatpush1.msra.mxu0 %v1361
  %1387 = vmatprep.subr.mxu0 0.0
  %1388 = vmatpush1.msra.mxu0 %v1362
  %1389 = vmatprep.subr.mxu0 0.0
  %1390 = vmatpush1.msra.mxu0 %v1363
  %1391 = vmatprep.subr.mxu0 0.0
  %1392 = vmatpush1.msra.mxu0 %v1364
  %1393 = vmatprep.subr.mxu0 0.0
  %1394 = vmatpush1.msra.mxu0 %v1365
  %1395 = vmatprep.subr.mxu0 0.0
  %1396 = vmatpush1.msra.mxu0 %v1366
  %1397 = vmatprep.subr.mxu0 0.0
  %1398 = vmatpush1.msra.mxu0 %v1367
  %1399 = vmatprep.subr.mxu0 0.0
  %1400 = vmatpush1.msra.mxu0 %v1368
  %1401 = vmatprep.subr.mxu0 0.0
  %1402 = vmatpush1.msra.mxu0 %v1369
  %1403 = vmatprep.subr.mxu0 0.0
  %1404 = vmatpush1.msra.mxu0 %v1370
  %1405 = vmatprep.subr.mxu0 0.0
  %1406 = vmatpush1.msra.mxu0 %v1371
  %1407 = vmatprep.subr.mxu0 0.0
  %1408 = vmatpush1.msra.mxu0 %v1372
  %1409 = vmatprep.subr.mxu0 0.0
  %1410 = vmatpush1.msra.mxu0 %v1373
  %1411 = vmatprep.subr.mxu0 0.0
  %1412 = vmatpush1.msra.mxu0 0.0
  %1413 = vmatprep.subr.mxu0 0.0
  %1414 = vmatpush1.msra.mxu0 0.0
  %1415 = vmatprep.subr.mxu0 0.0
  %1416 = vmatpush1.msra.mxu0 0.0
  %1417 = vmatprep.subr.mxu0 0.0
  %1418 = vmatpush1.msra.mxu0 0.0
  %1419 = vmatprep.subr.mxu0 0.0
  %1420 = vmatpush1.msra.mxu0 0.0
  %1421 = vmatprep.subr.mxu0 0.0
  %1422 = vmatpush1.msra.mxu0 0.0
  %1423 = vmatprep.subr.mxu0 0.0
  %1424 = vmatpush1.msra.mxu0 0.0
  %1425 = vmatprep.subr.mxu0 0.0
  %1426 = vmatpush1.msra.mxu0 0.0
  %1427 = vmatprep.subr.mxu0 0.0
  %1428 = vmatpush1.msra.mxu0 0.0
  %1429 = vmatprep.subr.mxu0 0.0
  %1430 = vmatpush1.msra.mxu0 0.0
  %1431 = vmatprep.subr.mxu0 0.0
  %1432 = vmatpush1.msra.mxu0 0.0
  %1433 = vmatprep.subr.mxu0 0.0
  %1434 = vmatpush1.msra.mxu0 0.0
  %1435 = vmatprep.subr.mxu0 0.0
  %1436 = vmatpush1.msra.mxu0 0.0
  %1437 = vmatprep.subr.mxu0 0.0
  %1438 = vmatpush1.msra.mxu0 0.0
  %1439 = vmatprep.subr.mxu0 0.0
  %1440 = vmatpush1.msra.mxu0 0.0
  %1441 = vmatprep.subr.mxu0 0.0
  %1442 = vmatpush1.msra.mxu0 0.0
  %1443 = vmatprep.mubr.f32.mxu0 0.0
  %1444 = vmatmul.mubr.f32.gmra.mrb[0].mxu0 %v1342
  %v1445 = vpop.f32.mrb[0].mxu0
  %v1446 = vadd.f32 %v1378, %v1445
  %v1447 = vpop.f32.mrb[0].mxu0
  %1448 = vmatprep.mubr.f32.mxu0 0.0
  %1449 = vmatmul.mubr.f32.gmra.mrb[0].mxu0 %v1343
  %v1450 = vpop.f32.mrb[0].mxu0
  %v1451 = vadd.f32 %v1378, %v1450
  %v1452 = vpop.f32.mrb[0].mxu0
  %1453 = vmatprep.mubr.f32.mxu0 0.0
  %1454 = vmatmul.mubr.f32.gmra.mrb[0].mxu0 %v1344
  %v1455 = vpop.f32.mrb[0].mxu0
  %v1456 = vadd.f32 %v1378, %v1455
  %v1457 = vpop.f32.mrb[0].mxu0
  %1458 = vmatprep.mubr.f32.mxu0 0.0
  %1459 = vmatmul.mubr.f32.gmra.mrb[0].mxu0 %v1345
  %v1460 = vpop.f32.mrb[0].mxu0
  %v1461 = vadd.f32 %v1378, %v1460
  %v1462 = vpop.f32.mrb[0].mxu0
  %1463 = vmatprep.mubr.f32.mxu0 0.0
  %1464 = vmatmul.mubr.f32.gmra.mrb[0].mxu0 %v1346
  %v1465 = vpop.f32.mrb[0].mxu0
  %v1466 = vadd.f32 %v1378, %v1465
  %v1467 = vpop.f32.mrb[0].mxu0
  %1468 = vmatprep.mubr.f32.mxu0 0.0
  %1469 = vmatmul.mubr.f32.gmra.mrb[0].mxu0 %v1347
  %v1470 = vpop.f32.mrb[0].mxu0
  %v1471 = vadd.f32 %v1378, %v1470
  %v1472 = vpop.f32.mrb[0].mxu0
  %1473 = vmatprep.mubr.f32.mxu0 0.0
  %1474 = vmatmul.mubr.f32.gmra.mrb[0].mxu0 %v1348
  %v1475 = vpop.f32.mrb[0].mxu0
  %v1476 = vadd.f32 %v1378, %v1475
  %v1477 = vpop.f32.mrb[0].mxu0
  %1478 = vmatprep.mubr.f32.mxu0 0.0
  %1479 = vmatmul.mubr.f32.gmra.mrb[0].mxu0 %v1349
  %v1480 = vpop.f32.mrb[0].mxu0
  %v1481 = vadd.f32 %v1378, %v1480
  %v1482 = vpop.f32.mrb[0].mxu0
  %1483 = vmatprep.mubr.f32.mxu0 0.0
  %1484 = vmatmul.mubr.f32.gmra.mrb[0].mxu0 %v1350
  %v1485 = vpop.f32.mrb[0].mxu0
  %v1486 = vadd.f32 %v1378, %v1485
  %v1487 = vpop.f32.mrb[0].mxu0
  %1488 = vmatprep.mubr.f32.mxu0 0.0
  %1489 = vmatmul.mubr.f32.gmra.mrb[0].mxu0 %v1351
  %v1490 = vpop.f32.mrb[0].mxu0
  %v1491 = vadd.f32 %v1378, %v1490
  %v1492 = vpop.f32.mrb[0].mxu0
  %1493 = vmatprep.mubr.f32.mxu0 0.0
  %1494 = vmatmul.mubr.f32.gmra.mrb[0].mxu0 %v1352
  %v1495 = vpop.f32.mrb[0].mxu0
  %v1496 = vadd.f32 %v1378, %v1495
  %v1497 = vpop.f32.mrb[0].mxu0
  %1498 = vmatprep.mubr.f32.mxu0 0.0
  %1499 = vmatmul.mubr.f32.gmra.mrb[0].mxu0 %v1353
  %v1500 = vpop.f32.mrb[0].mxu0
  %v1501 = vadd.f32 %v1378, %v1500
  %v1502 = vpop.f32.mrb[0].mxu0
  %1503 = vmatprep.mubr.f32.mxu0 0.0
  %1504 = vmatmul.mubr.f32.gmra.mrb[0].mxu0 %v1354
  %v1505 = vpop.f32.mrb[0].mxu0
  %v1506 = vadd.f32 %v1378, %v1505
  %v1507 = vpop.f32.mrb[0].mxu0
  %1508 = vmatprep.mubr.f32.mxu0 0.0
  %1509 = vmatmul.mubr.f32.gmra.mrb[0].mxu0 %v1355
  %v1510 = vpop.f32.mrb[0].mxu0
  %v1511 = vadd.f32 %v1378, %v1510
  %v1512 = vpop.f32.mrb[0].mxu0
  %1513 = vmatprep.mubr.f32.mxu0 0.0
  %1514 = vmatmul.mubr.f32.gmra.mrb[0].mxu0 %v1356
  %v1515 = vpop.f32.mrb[0].mxu0
  %v1516 = vadd.f32 %v1378, %v1515
  %v1517 = vpop.f32.mrb[0].mxu0
  %1518 = vmatprep.mubr.f32.mxu0 0.0
  %1519 = vmatmul.mubr.f32.gmra.mrb[0].mxu0 %v1357
  %v1520 = vpop.f32.mrb[0].mxu0
  %v1521 = vadd.f32 %v1378, %v1520
  %v1522 = vpop.f32.mrb[0].mxu0
  %1523 = vdwg.mxu0
  %v1524 = vadd.f32 %v820, %v1446
  %v1525 = vadd.f32 %v821, %v1451
  %v1526 = vadd.f32 %v822, %v1456
  %v1527 = vadd.f32 %v823, %v1461
  %v1528 = vadd.f32 %v824, %v1466
  %v1529 = vadd.f32 %v825, %v1471
  %v1530 = vadd.f32 %v826, %v1476
  %v1531 = vadd.f32 %v827, %v1481
  %v1532 = vadd.f32 %v828, %v1486
  %v1533 = vadd.f32 %v829, %v1491
  %v1534 = vadd.f32 %v830, %v1496
  %v1535 = vadd.f32 %v831, %v1501
  %v1536 = vadd.f32 %v832, %v1506
  %v1537 = vadd.f32 %v833, %v1511
  %v1538 = vadd.f32 %v834, %v1516
  %v1539 = vadd.f32 %v835, %v1521
  %1540 = vst.msk [vmem:[%s5] sm:$0xff] %vm36, %v1524
  %1541 = vst.msk [vmem:[%s5 + $0x8] sm:$0xff] %vm36, %v1525
  %1542 = vst.msk [vmem:[%s5 + $0x10] sm:$0xff] %vm36, %v1526
  %1543 = vst.msk [vmem:[%s5 + $0x18] sm:$0xff] %vm36, %v1527
  %1544 = vst.msk [vmem:[%s5 + $0x20] sm:$0xff] %vm36, %v1528
  %1545 = vst.msk [vmem:[%s5 + $0x28] sm:$0xff] %vm36, %v1529
  %1546 = vst.msk [vmem:[%s5 + $0x30] sm:$0xff] %vm36, %v1530
  %1547 = vst.msk [vmem:[%s5 + $0x38] sm:$0xff] %vm36, %v1531
  %1548 = vst.msk [vmem:[%s5 + $0x40] sm:$0xff] %vm36, %v1532
  %1549 = vst.msk [vmem:[%s5 + $0x48] sm:$0xff] %vm36, %v1533
  %1550 = vst.msk [vmem:[%s5 + $0x50] sm:$0xff] %vm36, %v1534
  %1551 = vst.msk [vmem:[%s5 + $0x58] sm:$0xff] %vm36, %v1535
  %1552 = vst.msk [vmem:[%s5 + $0x60] sm:$0xff] %vm36, %v1536
  %1553 = vst.msk [vmem:[%s5 + $0x68] sm:$0xff] %vm36, %v1537
  %1554 = vst.msk [vmem:[%s5 + $0x70] sm:$0xff] %vm36, %v1538
  %1555 = vst.msk [vmem:[%s5 + $0x78] sm:$0xff] %vm36, %v1539
  // Predicated region
  $region22: #{tpu_custom_call.1} parent=0 // pred_check
    _
  $region23: #{tpu_custom_call.1} parent=0 // pred_check_branch
    %1557 = sbr.rel (0) target = $region25
  $region24: #{tpu_custom_call.1} parent=0 // pred_region
    _
  $region25: #{tpu_custom_call.1} parent=0 // pred_fallthru
    _
  // Predicated region
  $region26: #{tpu_custom_call.1} parent=0 // pred_check
    _
  $region27: #{tpu_custom_call.1} parent=0 // pred_check_branch
    %1559 = sbr.rel (0) target = $region29
  $region28: #{tpu_custom_call.1} parent=0 // pred_region
    _
  $region29: #{tpu_custom_call.1} parent=0 // pred_fallthru
    _

</llo_original>
